<compile_context>
chip_gen: v6e
topology: v6e:2x2x1
jax: 0.10.0
libtpu: 0.0.40
codegen_flags: <defaults>
</compile_context>

<pallas_src>
import functools

import jax
import jax.numpy as jnp
import numpy as np
from jax.experimental import pallas as pl
from jax.experimental.pallas import tpu as pltpu

_TM = 128                      # H-row tile: multiple of 128 (MXU-native on v5e/v6e/v7x)
_LANE = 128                    # lane width; D / V padded to multiples of this
_VMEM_LIMIT = 64 * 1024 * 1024


def _round_up(x, m):
    return (x + m - 1) // m * m


def _pad2d(x, rows, cols):
    x = jnp.asarray(x, jnp.float32)
    return jnp.pad(x, ((0, rows - x.shape[0]), (0, cols - x.shape[1])))


def _chain2_loss_kernel(alpha, n_i, n_j,
                        w_hdT_ref, w_hh_ref, w_hd_ref, w_dd_ref, w_dv_ref,
                        dp_norm_ref, dp_mask_ref,
                        w_dv_new_ref, x_ref, loss_ref, acc_ref):
    """Grid (n_i, n_j) over (tm, tm) tiles of W_hh.

    Accumulates G = W_hd^T @ W_hh @ W_hd into a (Dp, Dp) f32 scratch; on the last
    grid step computes X = W_dd @ W_dv (shared with chain 1), the chain-2 output
    W_dv_new = a*(G @ X) + (1-a)*dp_norm*dp_mask, and the f32 masked loss on the
    *old* W_dv.
    """
    f32 = jnp.float32
    bf16 = jnp.bfloat16
    i = pl.program_id(0)
    j = pl.program_id(1)

    @pl.when(jnp.logical_and(i == 0, j == 0))
    def _init():
        acc_ref[...] = jnp.zeros_like(acc_ref)

    # G += W_hd[i]^T @ (W_hh[i, j] @ W_hd[j])   -- bf16 operands, f32 accumulation.
    p = jnp.dot(w_hh_ref[...], w_hd_ref[...], preferred_element_type=f32)      # (tm, Dp)
    acc_ref[...] += jnp.dot(w_hdT_ref[...], p.astype(bf16),
                            preferred_element_type=f32)                         # (Dp, Dp)

    @pl.when(jnp.logical_and(i == n_i - 1, j == n_j - 1))
    def _finalize():
        w_dv_f32 = w_dv_ref[...]                                                # (Dp, Vp) f32
        x = jnp.dot(w_dd_ref[...], w_dv_f32.astype(bf16),
                    preferred_element_type=f32)                                 # (Dp, Vp)
        x_b = x.astype(bf16)
        x_ref[...] = x_b                                                        # reused by chain 1
        s = jnp.dot(acc_ref[...].astype(bf16), x_b,
                    preferred_element_type=f32)                                 # (Dp, Vp)
        dp_norm = dp_norm_ref[...]
        dp_mask = dp_mask_ref[...]
        w_dv_new_ref[...] = alpha * s + (1.0 - alpha) * dp_norm * dp_mask
        tmp = dp_mask * (w_dv_f32 - dp_norm)                                    # pure f32 loss path
        loss_ref[...] = jnp.sum(tmp * tmp, axis=(0, 1), keepdims=True)


def _chain1_kernel(alpha, w_hd_ref, x_ref, w_vv_ref, w_dvT_ref, hd_norm_ref, out_ref):
    """Grid (n_h,) over H-row tiles ("parallel" -> megacore):
       W_hd_new[i] = a * (((W_hd[i] @ X) @ W_vv) @ W_dv^T) + (1-a) * hd_norm[i]."""
    f32 = jnp.float32
    bf16 = jnp.bfloat16
    y = jnp.dot(w_hd_ref[...], x_ref[...], preferred_element_type=f32)          # (tm, Vp)
    y = jnp.dot(y.astype(bf16), w_vv_ref[...], preferred_element_type=f32)      # (tm, Vp)
    t = jnp.dot(y.astype(bf16), w_dvT_ref[...], preferred_element_type=f32)     # (tm, Dp)
    out_ref[...] = alpha * t + (1.0 - alpha) * hd_norm_ref[...]


@functools.partial(jax.jit, static_argnums=(0, 1))
def hnm_forward(steps, alpha,
                drug_protein, drug_protein_norm, drug_human, drug_human_norm,
                drug_drug, drug_drug_norm, human_human, human_human_norm,
                human_human_integration, human_human_integration_norm,
                human_drug, human_drug_norm, human_virus, human_virus_norm,
                virus_virus, virus_virus_norm, virus_human, virus_human_norm,
                protein_drug, protein_drug_norm, drug_protein_mask, W_hd, W_dv):
    """Mirrors HNM.forward's signature. The PyTorch forward performs exactly one
    propagation step (it never loops over `steps`); many inputs are unused there
    and are ignored here as well."""
    del steps
    del drug_protein, drug_human, drug_human_norm, drug_drug, human_human
    del human_human_integration, human_human_integration_norm, human_drug
    del human_virus, human_virus_norm, virus_virus, virus_human, virus_human_norm
    del protein_drug, protein_drug_norm

    alpha = float(alpha)
    f32, bf16 = jnp.float32, jnp.bfloat16

    H, D = W_hd.shape
    V = W_dv.shape[1]
    tm = _TM
    Hp = _round_up(H, tm)
    Dp = _round_up(D, _LANE)
    Vp = _round_up(V, _LANE)
    n_h = Hp // tm

    # Zero-pad to lane-dense / tile-aligned shapes (exact for every op below).
    w_hd_p = _pad2d(W_hd, Hp, Dp)
    w_dv_p = _pad2d(W_dv, Dp, Vp)                                # stays f32 (loss path)
    w_dd_b = _pad2d(drug_drug_norm, Dp, Dp).astype(bf16)
    w_vv_b = _pad2d(virus_virus_norm, Vp, Vp).astype(bf16)
    w_hh_b = _pad2d(human_human_norm, Hp, Hp).astype(bf16)
    hd_norm_p = _pad2d(human_drug_norm, Hp, Dp)
    dp_norm_p = _pad2d(drug_protein_norm, Dp, Vp)
    dp_mask_p = _pad2d(drug_protein_mask, Dp, Vp)

    w_hd_b = w_hd_p.astype(bf16)
    w_hdT_b = w_hd_b.T                                           # precomputed transposes ->
    w_dvT_b = w_dv_p.astype(bf16).T                              # no XLU transpose in-kernel

    # ---- Kernel A: chain 2 (Gram reduction over H tiles) + shared X + loss ----
    w_dv_new_p, x_b, loss = pl.pallas_call(
        functools.partial(_chain2_loss_kernel, alpha, n_h, n_h),
        grid=(n_h, n_h),
        in_specs=[
            pl.BlockSpec((Dp, tm), lambda i, j: (0, i)),         # W_hd^T column tile
            pl.BlockSpec((tm, tm), lambda i, j: (i, j)),         # W_hh tile
            pl.BlockSpec((tm, Dp), lambda i, j: (j, 0)),         # W_hd row tile
            pl.BlockSpec((Dp, Dp), lambda i, j: (0, 0)),         # W_dd
            pl.BlockSpec((Dp, Vp), lambda i, j: (0, 0)),         # W_dv (f32)
            pl.BlockSpec((Dp, Vp), lambda i, j: (0, 0)),         # drug_protein_norm
            pl.BlockSpec((Dp, Vp), lambda i, j: (0, 0)),         # drug_protein_mask
        ],
        out_shape=(
            jax.ShapeDtypeStruct((Dp, Vp), f32),                 # W_dv_new (padded)
            jax.ShapeDtypeStruct((Dp, Vp), bf16),                # X = W_dd @ W_dv
            jax.ShapeDtypeStruct((1, 1), f32),                   # train_loss
        ),
        out_specs=(
            pl.BlockSpec((Dp, Vp), lambda i, j: (0, 0)),
            pl.BlockSpec((Dp, Vp), lambda i, j: (0, 0)),
            pl.BlockSpec((1, 1), lambda i, j: (0, 0)),
        ),
        scratch_shapes=[pltpu.VMEM((Dp, Dp), f32)],
        compiler_params=pltpu.CompilerParams(
            dimension_semantics=("arbitrary", "arbitrary"),
            vmem_limit_bytes=_VMEM_LIMIT),
    )(w_hdT_b, w_hh_b, w_hd_b, w_dd_b, w_dv_p, dp_norm_p, dp_mask_p)

    # ---- Kernel B: chain 1, H-row tiles sharded across TensorCores -----------
    w_hd_new_p = pl.pallas_call(
        functools.partial(_chain1_kernel, alpha),
        grid=(n_h,),
        in_specs=[
            pl.BlockSpec((tm, Dp), lambda i: (i, 0)),            # W_hd row tile
            pl.BlockSpec((Dp, Vp), lambda i: (0, 0)),            # X (from kernel A)
            pl.BlockSpec((Vp, Vp), lambda i: (0, 0)),            # W_vv
            pl.BlockSpec((Vp, Dp), lambda i: (0, 0)),            # W_dv^T
            pl.BlockSpec((tm, Dp), lambda i: (i, 0)),            # human_drug_norm tile
        ],
        out_shape=jax.ShapeDtypeStruct((Hp, Dp), f32),
        out_specs=pl.BlockSpec((tm, Dp), lambda i: (i, 0)),
        compiler_params=pltpu.CompilerParams(
            dimension_semantics=("parallel",),
            vmem_limit_bytes=_VMEM_LIMIT),
    )(w_hd_b, x_b, w_vv_b, w_dvT_b, hd_norm_p)

    return loss[0, 0], w_hd_new_p[:H, :D], w_dv_new_p[:D, :V]


def _hnm_reference(alpha, W_hd, W_dd, W_dv, W_vv, W_hh,
                   human_drug_norm, drug_protein_norm, drug_protein_mask):
    W_hd_new = alpha * (W_hd @ W_dd @ W_dv @ W_vv @ W_dv.T) \
        + (1 - alpha) * human_drug_norm
    W_dv_new = alpha * (W_hd.T @ W_hh @ W_hd @ W_dd @ W_dv) \
        + (1 - alpha) * drug_protein_norm * drug_protein_mask
    tmp = drug_protein_mask * (W_dv - drug_protein_norm)
    return jnp.sum(tmp * tmp), W_hd_new, W_dv_new


if __name__ == "__main__":
    # Small deterministic shapes; H spans two 128-row tiles so the (2, 2)
    # reduction grid and the parallel row grid are actually exercised.
    H, D, V = 200, 16, 24
    steps, alpha = 3, 0.4

    key = jax.random.PRNGKey(0)
    ks = jax.random.split(key, 8)
    W_hd = jax.random.uniform(ks[0], (H, D), jnp.float32)
    W_dv = jax.random.uniform(ks[1], (D, V), jnp.float32)
    drug_drug_norm = jax.random.uniform(ks[2], (D, D), jnp.float32)
    virus_virus_norm = jax.random.uniform(ks[3], (V, V), jnp.float32)
    human_human_norm = jax.random.uniform(ks[4], (H, H), jnp.float32)
    human_drug_norm = jax.random.uniform(ks[5], (H, D), jnp.float32)
    drug_protein_norm = jax.random.uniform(ks[6], (D, V), jnp.float32)
    drug_protein_mask = (jax.random.uniform(ks[7], (D, V), jnp.float32) > 0.5
                         ).astype(jnp.float32)

    # Inputs that HNM.forward accepts but never uses (passed as zeros).
    z = jnp.zeros
    unused = dict(
        drug_protein=z((D, V)), drug_human=z((D, H)), drug_human_norm=z((D, H)),
        drug_drug=z((D, D)), human_human=z((H, H)),
        human_human_integration=z((H, H)), human_human_integration_norm=z((H, H)),
        human_drug=z((H, D)), human_virus=z((H, V)), human_virus_norm=z((H, V)),
        virus_virus=z((V, V)), virus_human=z((V, H)), virus_human_norm=z((V, H)),
        protein_drug=z((V, D)), protein_drug_norm=z((V, D)),
    )

    loss, w_hd_new, w_dv_new = hnm_forward(
        steps, alpha,
        unused["drug_protein"], drug_protein_norm,
        unused["drug_human"], unused["drug_human_norm"],
        unused["drug_drug"], drug_drug_norm,
        unused["human_human"], human_human_norm,
        unused["human_human_integration"], unused["human_human_integration_norm"],
        unused["human_drug"], human_drug_norm,
        unused["human_virus"], unused["human_virus_norm"],
        unused["virus_virus"], virus_virus_norm,
        unused["virus_human"], unused["virus_human_norm"],
        unused["protein_drug"], unused["protein_drug_norm"],
        drug_protein_mask, W_hd, W_dv)
    jax.block_until_ready((loss, w_hd_new, w_dv_new))

    # Correctness check against a plain-JAX f32 reference of the PyTorch math.
    # The matmul chains use bf16 MXU operands (f32 accumulation), so the matrix
    # outputs get a looser tolerance; the loss path is pure f32 and stays tight.
    ref_loss, ref_hd, ref_dv = _hnm_reference(
        alpha, W_hd, drug_drug_norm, W_dv, virus_virus_norm, human_human_norm,
        human_drug_norm, drug_protein_norm, drug_protein_mask)
    np.testing.assert_allclose(np.asarray(loss), np.asarray(ref_loss),
                               rtol=1e-4, atol=1e-4)
    np.testing.assert_allclose(np.asarray(w_hd_new), np.asarray(ref_hd),
                               rtol=5e-2, atol=1e-2)
    np.testing.assert_allclose(np.asarray(w_dv_new), np.asarray(ref_dv),
                               rtol=5e-2, atol=1e-2)

    print("KERNEL_OK")
</pallas_src>

<mosaic_0001>
module attributes {stable_mosaic.version = 11 : i64} {
  func.func @_chain2_loss_kernel(%arg0: i32, %arg1: i32, %arg2: memref<128x128xbf16, #tpu.memory_space<vmem>>, %arg3: memref<128x128xbf16, #tpu.memory_space<vmem>>, %arg4: memref<128x128xbf16, #tpu.memory_space<vmem>>, %arg5: memref<128x128xbf16, #tpu.memory_space<vmem>>, %arg6: memref<128x128xf32, #tpu.memory_space<vmem>>, %arg7: memref<128x128xf32, #tpu.memory_space<vmem>>, %arg8: memref<128x128xf32, #tpu.memory_space<vmem>>, %arg9: memref<128x128xf32, #tpu.memory_space<vmem>>, %arg10: memref<128x128xbf16, #tpu.memory_space<vmem>>, %arg11: memref<1x1xf32, #tpu.memory_space<vmem>>, %arg12: memref<128x128xf32, #tpu.memory_space<vmem>>) attributes {dimension_semantics = [#tpu.dimension_semantics<arbitrary>, #tpu.dimension_semantics<arbitrary>], iteration_bounds = array<i64: 2, 2>, scalar_prefetch = 0 : i64, scratch_operands = 1 : i64, tpu.core_type = #tpu.core_type<tc>, window_params = [{transform_indices = @transform_0, window_bounds = array<i64: 128, 128>}, {transform_indices = @transform_1, window_bounds = array<i64: 128, 128>}, {transform_indices = @transform_2, window_bounds = array<i64: 128, 128>}, {pipeline_mode = #tpu.pipeline_mode<synchronous>, transform_indices = @transform_3, window_bounds = array<i64: 128, 128>}, {pipeline_mode = #tpu.pipeline_mode<synchronous>, transform_indices = @transform_4, window_bounds = array<i64: 128, 128>}, {pipeline_mode = #tpu.pipeline_mode<synchronous>, transform_indices = @transform_5, window_bounds = array<i64: 128, 128>}, {pipeline_mode = #tpu.pipeline_mode<synchronous>, transform_indices = @transform_6, window_bounds = array<i64: 128, 128>}, {pipeline_mode = #tpu.pipeline_mode<synchronous>, transform_indices = @transform_7, window_bounds = array<i64: 128, 128>}, {pipeline_mode = #tpu.pipeline_mode<synchronous>, transform_indices = @transform_8, window_bounds = array<i64: 128, 128>}, {pipeline_mode = #tpu.pipeline_mode<synchronous>, transform_indices = @transform_9, window_bounds = array<i64: 1, 1>}]} {
    %c0_i32 = arith.constant 0 : i32
    %0 = arith.cmpi eq, %arg0, %c0_i32 : i32
    %c0_i32_0 = arith.constant 0 : i32
    %1 = arith.cmpi eq, %arg1, %c0_i32_0 : i32
    %2 = arith.andi %0, %1 : i1
    %3 = arith.extui %2 : i1 to i32
    %c0_i32_1 = arith.constant 0 : i32
    %4 = arith.cmpi ne, %3, %c0_i32_1 : i32
    scf.if %4 {
      %cst_14 = arith.constant 0.000000e+00 : f32
      %19 = vector.broadcast %cst_14 : f32 to vector<128x128xf32>
      %c0_15 = arith.constant 0 : index
      %c0_16 = arith.constant 0 : index
      %20 = vector.load %arg12[%c0_15, %c0_16] : memref<128x128xf32, #tpu.memory_space<vmem>>, vector<128x128xf32>
      tpu.vector_store %arg12[%c0_15, %c0_16], %19 {strides = array<i32>} : memref<128x128xf32, #tpu.memory_space<vmem>>, vector<128x128xf32>,
    } else {
    }
    %c0 = arith.constant 0 : index
    %c0_2 = arith.constant 0 : index
    %5 = vector.load %arg3[%c0, %c0_2] : memref<128x128xbf16, #tpu.memory_space<vmem>>, vector<128x128xbf16>
    %c0_3 = arith.constant 0 : index
    %c0_4 = arith.constant 0 : index
    %6 = vector.load %arg4[%c0_3, %c0_4] : memref<128x128xbf16, #tpu.memory_space<vmem>>, vector<128x128xbf16>
    %cst = arith.constant dense<0.000000e+00> : vector<128x128xf32>
    %7 = tpu.matmul %5, %6, %cst {dimension_numbers = #tpu.dot_dimension_numbers<[1], [0], [0], [1], [0, 0, 1, 1], [], []>} : vector<128x128xbf16>, vector<128x128xbf16>, vector<128x128xf32> -> vector<128x128xf32>
    %c0_5 = arith.constant 0 : index
    %c0_6 = arith.constant 0 : index
    %8 = vector.load %arg12[%c0_5, %c0_6] : memref<128x128xf32, #tpu.memory_space<vmem>>, vector<128x128xf32>
    %c0_7 = arith.constant 0 : index
    %c0_8 = arith.constant 0 : index
    %9 = vector.load %arg2[%c0_7, %c0_8] : memref<128x128xbf16, #tpu.memory_space<vmem>>, vector<128x128xbf16>
    %10 = arith.truncf %7 : vector<128x128xf32> to vector<128x128xbf16>
    %cst_9 = arith.constant dense<0.000000e+00> : vector<128x128xf32>
    %11 = tpu.matmul %9, %10, %cst_9 {dimension_numbers = #tpu.dot_dimension_numbers<[1], [0], [0], [1], [0, 0, 1, 1], [], []>} : vector<128x128xbf16>, vector<128x128xbf16>, vector<128x128xf32> -> vector<128x128xf32>
    %12 = arith.addf %8, %11 : vector<128x128xf32>
    %c0_10 = arith.constant 0 : index
    %c0_11 = arith.constant 0 : index
    %13 = vector.load %arg12[%c0_10, %c0_11] : memref<128x128xf32, #tpu.memory_space<vmem>>, vector<128x128xf32>
    tpu.vector_store %arg12[%c0_10, %c0_11], %12 {strides = array<i32>} : memref<128x128xf32, #tpu.memory_space<vmem>>, vector<128x128xf32>,
    %c1_i32 = arith.constant 1 : i32
    %14 = arith.cmpi eq, %arg0, %c1_i32 : i32
    %c1_i32_12 = arith.constant 1 : i32
    %15 = arith.cmpi eq, %arg1, %c1_i32_12 : i32
    %16 = arith.andi %14, %15 : i1
    %17 = arith.extui %16 : i1 to i32
    %c0_i32_13 = arith.constant 0 : i32
    %18 = arith.cmpi ne, %17, %c0_i32_13 : i32
    scf.if %18 {
      %c0_14 = arith.constant 0 : index
      %c0_15 = arith.constant 0 : index
      %19 = vector.load %arg6[%c0_14, %c0_15] : memref<128x128xf32, #tpu.memory_space<vmem>>, vector<128x128xf32>
      %c0_16 = arith.constant 0 : index
      %c0_17 = arith.constant 0 : index
      %20 = vector.load %arg5[%c0_16, %c0_17] : memref<128x128xbf16, #tpu.memory_space<vmem>>, vector<128x128xbf16>
      %21 = arith.truncf %19 : vector<128x128xf32> to vector<128x128xbf16>
      %cst_18 = arith.constant dense<0.000000e+00> : vector<128x128xf32>
      %22 = tpu.matmul %20, %21, %cst_18 {dimension_numbers = #tpu.dot_dimension_numbers<[1], [0], [0], [1], [0, 0, 1, 1], [], []>} : vector<128x128xbf16>, vector<128x128xbf16>, vector<128x128xf32> -> vector<128x128xf32>
      %23 = arith.truncf %22 : vector<128x128xf32> to vector<128x128xbf16>
      %c0_19 = arith.constant 0 : index
      %c0_20 = arith.constant 0 : index
      %24 = vector.load %arg10[%c0_19, %c0_20] : memref<128x128xbf16, #tpu.memory_space<vmem>>, vector<128x128xbf16>
      tpu.vector_store %arg10[%c0_19, %c0_20], %23 {strides = array<i32>} : memref<128x128xbf16, #tpu.memory_space<vmem>>, vector<128x128xbf16>,
      %c0_21 = arith.constant 0 : index
      %c0_22 = arith.constant 0 : index
      %25 = vector.load %arg12[%c0_21, %c0_22] : memref<128x128xf32, #tpu.memory_space<vmem>>, vector<128x128xf32>
      %26 = arith.truncf %25 : vector<128x128xf32> to vector<128x128xbf16>
      %cst_23 = arith.constant dense<0.000000e+00> : vector<128x128xf32>
      %27 = tpu.matmul %26, %23, %cst_23 {dimension_numbers = #tpu.dot_dimension_numbers<[1], [0], [0], [1], [0, 0, 1, 1], [], []>} : vector<128x128xbf16>, vector<128x128xbf16>, vector<128x128xf32> -> vector<128x128xf32>
      %c0_24 = arith.constant 0 : index
      %c0_25 = arith.constant 0 : index
      %28 = vector.load %arg7[%c0_24, %c0_25] : memref<128x128xf32, #tpu.memory_space<vmem>>, vector<128x128xf32>
      %c0_26 = arith.constant 0 : index
      %c0_27 = arith.constant 0 : index
      %29 = vector.load %arg8[%c0_26, %c0_27] : memref<128x128xf32, #tpu.memory_space<vmem>>, vector<128x128xf32>
      %cst_28 = arith.constant 4.000000e-01 : f32
      %30 = vector.broadcast %cst_28 : f32 to vector<128x128xf32>
      %31 = arith.mulf %30, %27 : vector<128x128xf32>
      %cst_29 = arith.constant 6.000000e-01 : f32
      %32 = vector.broadcast %cst_29 : f32 to vector<128x128xf32>
      %33 = arith.mulf %32, %28 : vector<128x128xf32>
      %34 = arith.mulf %33, %29 : vector<128x128xf32>
      %35 = arith.addf %31, %34 : vector<128x128xf32>
      %c0_30 = arith.constant 0 : index
      %c0_31 = arith.constant 0 : index
      %36 = vector.load %arg9[%c0_30, %c0_31] : memref<128x128xf32, #tpu.memory_space<vmem>>, vector<128x128xf32>
      tpu.vector_store %arg9[%c0_30, %c0_31], %35 {strides = array<i32>} : memref<128x128xf32, #tpu.memory_space<vmem>>, vector<128x128xf32>,
      %37 = arith.subf %19, %28 : vector<128x128xf32>
      %38 = arith.mulf %29, %37 : vector<128x128xf32>
      %39 = arith.mulf %38, %38 : vector<128x128xf32>
      %40 = vector.shape_cast %39 : vector<128x128xf32> to vector<1x128x128xf32>
      %cst_32 = arith.constant dense<0.000000e+00> : vector<1xf32>
      %41 = vector.multi_reduction <add>, %40, %cst_32 [1, 2] : vector<1x128x128xf32> to vector<1xf32>
      %42 = vector.shape_cast %41 : vector<1xf32> to vector<1x1x1xf32>
      %43 = vector.extract %42[0, 0, 0] : f32 from vector<1x1x1xf32>
      %44 = vector.broadcast %43 : f32 to vector<1x1xf32>
      %c0_33 = arith.constant 0 : index
      %c0_34 = arith.constant 0 : index
      %45 = vector.load %arg11[%c0_33, %c0_34] : memref<1x1xf32, #tpu.memory_space<vmem>>, vector<1x1xf32>
      tpu.vector_store %arg11[%c0_33, %c0_34], %44 {strides = array<i32>} : memref<1x1xf32, #tpu.memory_space<vmem>>, vector<1x1xf32>,
    } else {
    }
    return
  }
  func.func @transform_0(%arg0: i32, %arg1: i32) -> (i32, i32) {
    %c0_i32 = arith.constant 0 : i32
    %c0_i32_0 = arith.constant 0 : i32
    return %c0_i32, %arg0 : i32, i32
  }
  func.func @transform_1(%arg0: i32, %arg1: i32) -> (i32, i32) {
    %c0_i32 = arith.constant 0 : i32
    return %arg0, %arg1 : i32, i32
  }
  func.func @transform_2(%arg0: i32, %arg1: i32) -> (i32, i32) {
    %c0_i32 = arith.constant 0 : i32
    %c0_i32_0 = arith.constant 0 : i32
    return %arg1, %c0_i32 : i32, i32
  }
  func.func @transform_3(%arg0: i32, %arg1: i32) -> (i32, i32) {
    %c0_i32 = arith.constant 0 : i32
    %c0_i32_0 = arith.constant 0 : i32
    %c0_i32_1 = arith.constant 0 : i32
    return %c0_i32, %c0_i32_0 : i32, i32
  }
  func.func @transform_4(%arg0: i32, %arg1: i32) -> (i32, i32) {
    %c0_i32 = arith.constant 0 : i32
    %c0_i32_0 = arith.constant 0 : i32
    %c0_i32_1 = arith.constant 0 : i32
    return %c0_i32, %c0_i32_0 : i32, i32
  }
  func.func @transform_5(%arg0: i32, %arg1: i32) -> (i32, i32) {
    %c0_i32 = arith.constant 0 : i32
    %c0_i32_0 = arith.constant 0 : i32
    %c0_i32_1 = arith.constant 0 : i32
    return %c0_i32, %c0_i32_0 : i32, i32
  }
  func.func @transform_6(%arg0: i32, %arg1: i32) -> (i32, i32) {
    %c0_i32 = arith.constant 0 : i32
    %c0_i32_0 = arith.constant 0 : i32
    %c0_i32_1 = arith.constant 0 : i32
    return %c0_i32, %c0_i32_0 : i32, i32
  }
  func.func @transform_7(%arg0: i32, %arg1: i32) -> (i32, i32) {
    %c0_i32 = arith.constant 0 : i32
    %c0_i32_0 = arith.constant 0 : i32
    %c0_i32_1 = arith.constant 0 : i32
    return %c0_i32, %c0_i32_0 : i32, i32
  }
  func.func @transform_8(%arg0: i32, %arg1: i32) -> (i32, i32) {
    %c0_i32 = arith.constant 0 : i32
    %c0_i32_0 = arith.constant 0 : i32
    %c0_i32_1 = arith.constant 0 : i32
    return %c0_i32, %c0_i32_0 : i32, i32
  }
  func.func @transform_9(%arg0: i32, %arg1: i32) -> (i32, i32) {
    %c0_i32 = arith.constant 0 : i32
    %c0_i32_0 = arith.constant 0 : i32
    %c0_i32_1 = arith.constant 0 : i32
    return %c0_i32, %c0_i32_0 : i32, i32
  }
}

module attributes {stable_mosaic.version = 11 : i64} {
  func.func @_chain1_kernel(%arg0: i32, %arg1: memref<128x128xbf16, #tpu.memory_space<vmem>>, %arg2: memref<128x128xbf16, #tpu.memory_space<vmem>>, %arg3: memref<128x128xbf16, #tpu.memory_space<vmem>>, %arg4: memref<128x128xbf16, #tpu.memory_space<vmem>>, %arg5: memref<128x128xf32, #tpu.memory_space<vmem>>, %arg6: memref<128x128xf32, #tpu.memory_space<vmem>>) attributes {dimension_semantics = [#tpu.dimension_semantics<parallel>], iteration_bounds = array<i64: 2>, scalar_prefetch = 0 : i64, scratch_operands = 0 : i64, tpu.core_type = #tpu.core_type<tc>, window_params = [{transform_indices = @transform_0, window_bounds = array<i64: 128, 128>}, {pipeline_mode = #tpu.pipeline_mode<synchronous>, transform_indices = @transform_1, window_bounds = array<i64: 128, 128>}, {pipeline_mode = #tpu.pipeline_mode<synchronous>, transform_indices = @transform_2, window_bounds = array<i64: 128, 128>}, {pipeline_mode = #tpu.pipeline_mode<synchronous>, transform_indices = @transform_3, window_bounds = array<i64: 128, 128>}, {transform_indices = @transform_4, window_bounds = array<i64: 128, 128>}, {transform_indices = @transform_5, window_bounds = array<i64: 128, 128>}]} {
    %c0 = arith.constant 0 : index
    %c0_0 = arith.constant 0 : index
    %0 = vector.load %arg1[%c0, %c0_0] : memref<128x128xbf16, #tpu.memory_space<vmem>>, vector<128x128xbf16>
    %c0_1 = arith.constant 0 : index
    %c0_2 = arith.constant 0 : index
    %1 = vector.load %arg2[%c0_1, %c0_2] : memref<128x128xbf16, #tpu.memory_space<vmem>>, vector<128x128xbf16>
    %cst = arith.constant dense<0.000000e+00> : vector<128x128xf32>
    %2 = tpu.matmul %0, %1, %cst {dimension_numbers = #tpu.dot_dimension_numbers<[1], [0], [0], [1], [0, 0, 1, 1], [], []>} : vector<128x128xbf16>, vector<128x128xbf16>, vector<128x128xf32> -> vector<128x128xf32>
    %3 = arith.truncf %2 : vector<128x128xf32> to vector<128x128xbf16>
    %c0_3 = arith.constant 0 : index
    %c0_4 = arith.constant 0 : index
    %4 = vector.load %arg3[%c0_3, %c0_4] : memref<128x128xbf16, #tpu.memory_space<vmem>>, vector<128x128xbf16>
    %cst_5 = arith.constant dense<0.000000e+00> : vector<128x128xf32>
    %5 = tpu.matmul %3, %4, %cst_5 {dimension_numbers = #tpu.dot_dimension_numbers<[1], [0], [0], [1], [0, 0, 1, 1], [], []>} : vector<128x128xbf16>, vector<128x128xbf16>, vector<128x128xf32> -> vector<128x128xf32>
    %6 = arith.truncf %5 : vector<128x128xf32> to vector<128x128xbf16>
    %c0_6 = arith.constant 0 : index
    %c0_7 = arith.constant 0 : index
    %7 = vector.load %arg4[%c0_6, %c0_7] : memref<128x128xbf16, #tpu.memory_space<vmem>>, vector<128x128xbf16>
    %cst_8 = arith.constant dense<0.000000e+00> : vector<128x128xf32>
    %8 = tpu.matmul %6, %7, %cst_8 {dimension_numbers = #tpu.dot_dimension_numbers<[1], [0], [0], [1], [0, 0, 1, 1], [], []>} : vector<128x128xbf16>, vector<128x128xbf16>, vector<128x128xf32> -> vector<128x128xf32>
    %cst_9 = arith.constant 4.000000e-01 : f32
    %9 = vector.broadcast %cst_9 : f32 to vector<128x128xf32>
    %10 = arith.mulf %9, %8 : vector<128x128xf32>
    %c0_10 = arith.constant 0 : index
    %c0_11 = arith.constant 0 : index
    %11 = vector.load %arg5[%c0_10, %c0_11] : memref<128x128xf32, #tpu.memory_space<vmem>>, vector<128x128xf32>
    %cst_12 = arith.constant 6.000000e-01 : f32
    %12 = vector.broadcast %cst_12 : f32 to vector<128x128xf32>
    %13 = arith.mulf %12, %11 : vector<128x128xf32>
    %14 = arith.addf %10, %13 : vector<128x128xf32>
    %c0_13 = arith.constant 0 : index
    %c0_14 = arith.constant 0 : index
    %15 = vector.load %arg6[%c0_13, %c0_14] : memref<128x128xf32, #tpu.memory_space<vmem>>, vector<128x128xf32>
    tpu.vector_store %arg6[%c0_13, %c0_14], %14 {strides = array<i32>} : memref<128x128xf32, #tpu.memory_space<vmem>>, vector<128x128xf32>,
    return
  }
  func.func @transform_0(%arg0: i32) -> (i32, i32) {
    %c0_i32 = arith.constant 0 : i32
    %c0_i32_0 = arith.constant 0 : i32
    return %arg0, %c0_i32 : i32, i32
  }
  func.func @transform_1(%arg0: i32) -> (i32, i32) {
    %c0_i32 = arith.constant 0 : i32
    %c0_i32_0 = arith.constant 0 : i32
    %c0_i32_1 = arith.constant 0 : i32
    return %c0_i32, %c0_i32_0 : i32, i32
  }
  func.func @transform_2(%arg0: i32) -> (i32, i32) {
    %c0_i32 = arith.constant 0 : i32
    %c0_i32_0 = arith.constant 0 : i32
    %c0_i32_1 = arith.constant 0 : i32
    return %c0_i32, %c0_i32_0 : i32, i32
  }
  func.func @transform_3(%arg0: i32) -> (i32, i32) {
    %c0_i32 = arith.constant 0 : i32
    %c0_i32_0 = arith.constant 0 : i32
    %c0_i32_1 = arith.constant 0 : i32
    return %c0_i32, %c0_i32_0 : i32, i32
  }
  func.func @transform_4(%arg0: i32) -> (i32, i32) {
    %c0_i32 = arith.constant 0 : i32
    %c0_i32_0 = arith.constant 0 : i32
    return %arg0, %c0_i32 : i32, i32
  }
  func.func @transform_5(%arg0: i32) -> (i32, i32) {
    %c0_i32 = arith.constant 0 : i32
    %c0_i32_0 = arith.constant 0 : i32
    return %arg0, %c0_i32 : i32, i32
  }
}

</mosaic_0001>

<llo_original>
// kernel: hnm_forward.3
$region0: #{hnm_forward.3}
  #allocation0 [shape = 'u32[]', space=smem, size = 0x4, offset = 0x4, fixed_abs, tag = 'smem constant byte address 0x4 - core index']
  #allocation1 [shape = 'u32[144,128]{1,0:T(1,128)}', space=vmem, size = 0x12000, scoped, tag = 'internal scratch']
  %s0 = inlined_call_operand.vmem [shape: bf16[256,128], index: 0, kind: input, shape index: {}]
  %s1 = inlined_call_operand.vmem [shape: bf16[128,128], index: 1, kind: input, shape index: {}]
  %s2 = inlined_call_operand.vmem [shape: bf16[128,128], index: 2, kind: input, shape index: {}]
  %s3 = inlined_call_operand.vmem [shape: bf16[128,128], index: 3, kind: input, shape index: {}]
  %s4 = inlined_call_operand.vmem [shape: f32[256,128], index: 4, kind: input, shape index: {}]
  %s5 = inlined_call_operand.vmem [shape: f32[256,128], index: 5, kind: output, shape index: {}]
  %s6 = sld [smem:[#allocation0]]
  $region53: #{hnm_forward.3} parent=0
    _
  %s8 = ssub.s32 1, %s6
  %s9 = scalar_select 0, %s8, %s6
  loop: start=0, step=1, limit=4
  $region2: #{hnm_forward.3} parent=0 // loop_pre_header
    _
  $region3: #{hnm_forward.3} parent=0 // loop_header
    %s11 = sphi 0, %s15
    %p12 = scmp.ge.s32.totalorder %s11, 4
    %s21 = sphi 0, %s23
    %s24 = sphi 0, %s21
    %s25 = sphi 0, %s24
    %s41 = sphi 0, %s25
    %s45 = sphi 0, %s45
    %s47 = sphi 0, %s45
    %s48 = sphi 0, %s47
    %s62 = sphi 0, %s48
    %s66 = sphi 0, %s66
    %s68 = sphi 0, %s66
    %s69 = sphi 0, %s68
    %s83 = sphi 0, %s69
    %s87 = sphi 0, %s87
    %s89 = sphi 0, %s87
    %s90 = sphi 0, %s89
    %s104 = sphi 0, %s90
    %s110 = sphi 0, %s112
    %s113 = sphi 0, %s110
    %s114 = sphi 0, %s113
    %s130 = sphi 0, %s114
    %s136 = sphi 0, %s138
    %s139 = sphi 0, %s136
    %s140 = sphi 0, %s139
    %s156 = sphi 0, %s140
  $region4: #{hnm_forward.3} parent=0 // loop_header_branch
    %14 = sbr.rel (%p12) target = $region8
  $region5: #{hnm_forward.3} parent=0 // loop_body
    %s16 = ssub.s32 %s11, 1
    %s17 = ssub.s32 %s11, 2
    %s18 = sadd.s32 %s11, 1
    %s19 = ssub.s32 %s11, %s18
    %p20 = scmp.eq.s32.totalorder %s19, 0
    %s22 = sadd.s32 %s21, 1
    %s23 = scalar_select %p20, %s21, %s22
    %p26 = pneg %p20
    %p27 = scmp.eq.s32.totalorder %s11, 1
    %p28 = por %p26, %p27
    %p29 = scmp.ne.s32.totalorder %s21, %s24
    %p30 = scmp.eq.s32.totalorder %s11, 0
    %p31 = por %p29, %p30
    %p32 = scmp.ne.s32.totalorder %s21, %s24
    %p33 = scmp.eq.s32.totalorder %s16, 1
    %p34 = por %p32, %p33
    %p35 = scmp.ne.s32.totalorder %s24, %s25
    %p36 = scmp.eq.s32.totalorder %s16, 0
    %p37 = por %p35, %p36
    %p38 = scmp.ne.s32.totalorder %s24, %s25
    %p39 = scmp.eq.s32.totalorder %s17, 1
    %p40 = por %p38, %p39
    %p42 = scmp.ne.s32.totalorder %s25, %s41
    %p43 = scmp.eq.s32.totalorder %s17, 0
    %p44 = por %p42, %p43
    %s46 = sadd.s32 %s45, 1
    %p49 = scmp.eq.s32.totalorder %s11, 1
    %p50 = scmp.ne.s32.totalorder %s45, %s47
    %p51 = scmp.eq.s32.totalorder %s11, 0
    %p52 = por %p50, %p51
    %p53 = scmp.ne.s32.totalorder %s45, %s47
    %p54 = scmp.eq.s32.totalorder %s16, 1
    %p55 = por %p53, %p54
    %p56 = scmp.ne.s32.totalorder %s47, %s48
    %p57 = scmp.eq.s32.totalorder %s16, 0
    %p58 = por %p56, %p57
    %p59 = scmp.ne.s32.totalorder %s47, %s48
    %p60 = scmp.eq.s32.totalorder %s17, 1
    %p61 = por %p59, %p60
    %p63 = scmp.ne.s32.totalorder %s48, %s62
    %p64 = scmp.eq.s32.totalorder %s17, 0
    %p65 = por %p63, %p64
    %s67 = sadd.s32 %s66, 1
    %p70 = scmp.eq.s32.totalorder %s11, 1
    %p71 = scmp.ne.s32.totalorder %s66, %s68
    %p72 = scmp.eq.s32.totalorder %s11, 0
    %p73 = por %p71, %p72
    %p74 = scmp.ne.s32.totalorder %s66, %s68
    %p75 = scmp.eq.s32.totalorder %s16, 1
    %p76 = por %p74, %p75
    %p77 = scmp.ne.s32.totalorder %s68, %s69
    %p78 = scmp.eq.s32.totalorder %s16, 0
    %p79 = por %p77, %p78
    %p80 = scmp.ne.s32.totalorder %s68, %s69
    %p81 = scmp.eq.s32.totalorder %s17, 1
    %p82 = por %p80, %p81
    %p84 = scmp.ne.s32.totalorder %s69, %s83
    %p85 = scmp.eq.s32.totalorder %s17, 0
    %p86 = por %p84, %p85
    %s88 = sadd.s32 %s87, 1
    %p91 = scmp.eq.s32.totalorder %s11, 1
    %p92 = scmp.ne.s32.totalorder %s87, %s89
    %p93 = scmp.eq.s32.totalorder %s11, 0
    %p94 = por %p92, %p93
    %p95 = scmp.ne.s32.totalorder %s87, %s89
    %p96 = scmp.eq.s32.totalorder %s16, 1
    %p97 = por %p95, %p96
    %p98 = scmp.ne.s32.totalorder %s89, %s90
    %p99 = scmp.eq.s32.totalorder %s16, 0
    %p100 = por %p98, %p99
    %p101 = scmp.ne.s32.totalorder %s89, %s90
    %p102 = scmp.eq.s32.totalorder %s17, 1
    %p103 = por %p101, %p102
    %p105 = scmp.ne.s32.totalorder %s90, %s104
    %p106 = scmp.eq.s32.totalorder %s17, 0
    %p107 = por %p105, %p106
    %s108 = ssub.s32 %s11, %s18
    %p109 = scmp.eq.s32.totalorder %s108, 0
    %s111 = sadd.s32 %s110, 1
    %s112 = scalar_select %p109, %s110, %s111
    %p115 = pneg %p109
    %p116 = scmp.eq.s32.totalorder %s11, 1
    %p117 = por %p115, %p116
    %p118 = scmp.ne.s32.totalorder %s110, %s113
    %p119 = scmp.eq.s32.totalorder %s11, 0
    %p120 = por %p118, %p119
    %p121 = scmp.ne.s32.totalorder %s110, %s113
    %p122 = scmp.eq.s32.totalorder %s16, 1
    %p123 = por %p121, %p122
    %p124 = scmp.ne.s32.totalorder %s113, %s114
    %p125 = scmp.eq.s32.totalorder %s16, 0
    %p126 = por %p124, %p125
    %p127 = scmp.ne.s32.totalorder %s113, %s114
    %p128 = scmp.eq.s32.totalorder %s17, 1
    %p129 = por %p127, %p128
    %p131 = scmp.ne.s32.totalorder %s114, %s130
    %p132 = scmp.eq.s32.totalorder %s17, 0
    %p133 = por %p131, %p132
    %s134 = ssub.s32 %s11, %s18
    %p135 = scmp.eq.s32.totalorder %s134, 0
    %s137 = sadd.s32 %s136, 1
    %s138 = scalar_select %p135, %s136, %s137
    %p141 = pneg %p135
    %p142 = scmp.eq.s32.totalorder %s11, 1
    %p143 = por %p141, %p142
    %p144 = scmp.ne.s32.totalorder %s136, %s139
    %p145 = scmp.eq.s32.totalorder %s11, 0
    %p146 = por %p144, %p145
    %p147 = scmp.ne.s32.totalorder %s136, %s139
    %p148 = scmp.eq.s32.totalorder %s16, 1
    %p149 = por %p147, %p148
    %p150 = scmp.ne.s32.totalorder %s139, %s140
    %p151 = scmp.eq.s32.totalorder %s16, 0
    %p152 = por %p150, %p151
    %p153 = scmp.ne.s32.totalorder %s139, %s140
    %p154 = scmp.eq.s32.totalorder %s17, 1
    %p155 = por %p153, %p154
    %p157 = scmp.ne.s32.totalorder %s140, %s156
    %p158 = scmp.eq.s32.totalorder %s17, 0
    %p159 = por %p157, %p158
    %p160 = scmp.le.s32.totalorder 1, %s11
    %p161 = scmp.lt.s32.totalorder %s11, 3
    %p162 = pnand %p160, %p161
    %p163 = pneg %p162
    // Predicated region
    $region9: #{hnm_forward.3} parent=5 // pred_check
      _
    $region10: #{hnm_forward.3} parent=5 // pred_check_branch
      %165 = sbr.rel (%p162) target = $region12
    $region11: #{hnm_forward.3} parent=5 // pred_region
      %s166 = ssub.s32 %s11, 1
      // Predicated region
      $region13: #{hnm_forward.3} parent=11 // pred_check
        %p167 = pneg %p58
      $region14: #{hnm_forward.3} parent=11 // pred_check_branch
        %169 = sbr.rel (%p167) target = $region16
      $region15: #{hnm_forward.3} parent=11 // pred_region
        _
      $region16: #{hnm_forward.3} parent=11 // pred_fallthru
        _
      // Predicated region
      $region17: #{hnm_forward.3} parent=11 // pred_check
        %p170 = pneg %p79
      $region18: #{hnm_forward.3} parent=11 // pred_check_branch
        %172 = sbr.rel (%p170) target = $region20
      $region19: #{hnm_forward.3} parent=11 // pred_region
        _
      $region20: #{hnm_forward.3} parent=11 // pred_fallthru
        _
      // Predicated region
      $region21: #{hnm_forward.3} parent=11 // pred_check
        %p173 = pneg %p100
      $region22: #{hnm_forward.3} parent=11 // pred_check_branch
        %175 = sbr.rel (%p173) target = $region24
      $region23: #{hnm_forward.3} parent=11 // pred_region
        _
      $region24: #{hnm_forward.3} parent=11 // pred_fallthru
        _
    $region12: #{hnm_forward.3} parent=5 // pred_fallthru
      _
    %p176 = scmp.lt.s32.totalorder %s11, 2
    // Predicated region
    $region25: #{hnm_forward.3} parent=5 // pred_check
      %p177 = pneg %p176
    $region26: #{hnm_forward.3} parent=5 // pred_check_branch
      %179 = sbr.rel (%p177) target = $region28
    $region27: #{hnm_forward.3} parent=5 // pred_region
      // Predicated region
      $region29: #{hnm_forward.3} parent=27 // pred_check
        %p180 = pneg %p31
      $region30: #{hnm_forward.3} parent=27 // pred_check_branch
        %182 = sbr.rel (%p180) target = $region32
      $region31: #{hnm_forward.3} parent=27 // pred_region
        %s183 = smul.u32 16, %s11
        %p184 = scmp.lt.s32.totalorder %s183, 31
        %s185 = scalar_select %p184, %s183, 31
        %s186 = smul.addr %s185, 4
        %s187 = scalar_lea.vmem %s0, %s186
        %s188 = smul.u32 16, %s11
      $region32: #{hnm_forward.3} parent=27 // pred_fallthru
        _
      // Predicated region
      $region33: #{hnm_forward.3} parent=27 // pred_check
        %p189 = pneg %p120
      $region34: #{hnm_forward.3} parent=27 // pred_check_branch
        %191 = sbr.rel (%p189) target = $region36
      $region35: #{hnm_forward.3} parent=27 // pred_region
        %s192 = smul.u32 16, %s11
        %p193 = scmp.lt.s32.totalorder %s192, 31
        %s194 = scalar_select %p193, %s192, 31
        %s195 = smul.addr %s194, 8
        %s196 = scalar_lea.vmem %s4, %s195
        %s197 = smul.u32 16, %s11
      $region36: #{hnm_forward.3} parent=27 // pred_fallthru
        _
    $region28: #{hnm_forward.3} parent=5 // pred_fallthru
      _
    %p198 = scmp.le.s32.totalorder 1, %s11
    %p199 = scmp.lt.s32.totalorder %s11, 3
    %p200 = pnand %p198, %p199
    %p201 = pneg %p200
    // Predicated region
    $region37: #{hnm_forward.3} parent=5 // pred_check
      _
    $region38: #{hnm_forward.3} parent=5 // pred_check_branch
      %203 = sbr.rel (%p200) target = $region40
    $region39: #{hnm_forward.3} parent=5 // pred_region
      %s204 = ssub.s32 %s11, 1
      %s205 = smul.u32 16, %s16
      %p206 = scmp.lt.s32.totalorder %s205, 31
      %s207 = scalar_select %p206, %s205, 31
      %s208 = smul.addr %s207, 4
      %s209 = scalar_lea.vmem %s0, %s208
      %p210 = pneg %p37
      %p211 = pneg %p34
      %p212 = pneg %p58
      %p213 = pneg %p55
      %p214 = pneg %p79
      %p215 = pneg %p76
      %p216 = pneg %p100
      %p217 = pneg %p97
      %s218 = smul.u32 16, %s16
      %p219 = scmp.lt.s32.totalorder %s218, 31
      %s220 = scalar_select %p219, %s218, 31
      %s221 = smul.addr %s220, 8
      %s222 = scalar_lea.vmem %s4, %s221
      %p223 = pneg %p126
      %p224 = pneg %p123
      %p225 = pneg %p152
      %p226 = pneg %p149
      %s227 = smul.u32 16, %s16
      %p228 = scmp.lt.s32.totalorder %s227, 31
      %s229 = scalar_select %p228, %s227, 31
      %s230 = smul.addr %s229, 8
      %s231 = scalar_lea.vmem %s5, %s230
      %s232 = smul.u32 16, %s16
      %p233 = scmp.lt.s32.totalorder %s232, 31
      %s234 = scalar_select %p233, %s232, 31
      %s235 = smul.addr %s234, 4
      %s236 = scalar_lea.vmem %s0, %s235
      %s237 = smul.u32 16, %s16
      %s238 = smul.u32 16, %s16
      %p239 = scmp.lt.s32.totalorder %s238, 31
      %s240 = scalar_select %p239, %s238, 31
      %s241 = smul.addr %s240, 8
      %s242 = scalar_lea.vmem %s4, %s241
      %s243 = smul.u32 16, %s16
      %s244 = smul.u32 16, %s16
      %p245 = scmp.lt.s32.totalorder %s244, 31
      %s246 = scalar_select %p245, %s244, 31
      %s247 = smul.addr %s246, 8
      %s248 = scalar_lea.vmem %s5, %s247
      %s249 = smul.u32 16, %s16
      %v251 = vld [vmem:[%s236] sm:$0xf]
      %v252 = vld [vmem:[%s236 + $0x4] sm:$0xf]
      %v253 = vld [vmem:[%s236 + $0x8] sm:$0xf]
      %v254 = vld [vmem:[%s236 + $0xc] sm:$0xf]
      %v255 = vld [vmem:[%s236 + $0x10] sm:$0xf]
      %v256 = vld [vmem:[%s236 + $0x14] sm:$0xf]
      %v257 = vld [vmem:[%s236 + $0x18] sm:$0xf]
      %v258 = vld [vmem:[%s236 + $0x1c] sm:$0xf]
      %v259 = vld [vmem:[%s236 + $0x20] sm:$0xf]
      %v260 = vld [vmem:[%s236 + $0x24] sm:$0xf]
      %v261 = vld [vmem:[%s236 + $0x28] sm:$0xf]
      %v262 = vld [vmem:[%s236 + $0x2c] sm:$0xf]
      %v263 = vld [vmem:[%s236 + $0x30] sm:$0xf]
      %v264 = vld [vmem:[%s236 + $0x34] sm:$0xf]
      %v265 = vld [vmem:[%s236 + $0x38] sm:$0xf]
      %v266 = vld [vmem:[%s236 + $0x3c] sm:$0xf]
      %v267 = vld [vmem:[%s1] sm:$0xf]
      %v268 = vld [vmem:[%s1 + $0x4] sm:$0xf]
      %v269 = vld [vmem:[%s1 + $0x8] sm:$0xf]
      %v270 = vld [vmem:[%s1 + $0xc] sm:$0xf]
      %v271 = vld [vmem:[%s1 + $0x10] sm:$0xf]
      %v272 = vld [vmem:[%s1 + $0x14] sm:$0xf]
      %v273 = vld [vmem:[%s1 + $0x18] sm:$0xf]
      %v274 = vld [vmem:[%s1 + $0x1c] sm:$0xf]
      %v275 = vld [vmem:[%s1 + $0x20] sm:$0xf]
      %v276 = vld [vmem:[%s1 + $0x24] sm:$0xf]
      %v277 = vld [vmem:[%s1 + $0x28] sm:$0xf]
      %v278 = vld [vmem:[%s1 + $0x2c] sm:$0xf]
      %v279 = vld [vmem:[%s1 + $0x30] sm:$0xf]
      %v280 = vld [vmem:[%s1 + $0x34] sm:$0xf]
      %v281 = vld [vmem:[%s1 + $0x38] sm:$0xf]
      %v282 = vld [vmem:[%s1 + $0x3c] sm:$0xf]
      %v299 = vunpack.c.l.b16 %v251
      %v300 = vunpack.c.l.b16 %v252
      %v301 = vunpack.c.l.b16 %v253
      %v302 = vunpack.c.l.b16 %v254
      %v303 = vunpack.c.l.b16 %v255
      %v304 = vunpack.c.l.b16 %v256
      %v305 = vunpack.c.l.b16 %v257
      %v306 = vunpack.c.l.b16 %v258
      %v307 = vunpack.c.l.b16 %v259
      %v308 = vunpack.c.l.b16 %v260
      %v309 = vunpack.c.l.b16 %v261
      %v310 = vunpack.c.l.b16 %v262
      %v311 = vunpack.c.l.b16 %v263
      %v312 = vunpack.c.l.b16 %v264
      %v313 = vunpack.c.l.b16 %v265
      %v314 = vunpack.c.l.b16 %v266
      %v315 = vpack.c.b16 %v300, %v299
      %v316 = vpack.c.b16 %v302, %v301
      %v317 = vpack.c.b16 %v304, %v303
      %v318 = vpack.c.b16 %v306, %v305
      %v319 = vpack.c.b16 %v308, %v307
      %v320 = vpack.c.b16 %v310, %v309
      %v321 = vpack.c.b16 %v312, %v311
      %v322 = vpack.c.b16 %v314, %v313
      %v347 = vunpack.c.l.b16 %v267
      %v348 = vunpack.c.l.b16 %v268
      %v349 = vunpack.c.l.b16 %v269
      %v350 = vunpack.c.l.b16 %v270
      %v351 = vunpack.c.l.b16 %v271
      %v352 = vunpack.c.l.b16 %v272
      %v353 = vunpack.c.l.b16 %v273
      %v354 = vunpack.c.l.b16 %v274
      %v355 = vunpack.c.l.b16 %v275
      %v356 = vunpack.c.l.b16 %v276
      %v357 = vunpack.c.l.b16 %v277
      %v358 = vunpack.c.l.b16 %v278
      %v359 = vunpack.c.l.b16 %v279
      %v360 = vunpack.c.l.b16 %v280
      %v361 = vunpack.c.l.b16 %v281
      %v362 = vunpack.c.l.b16 %v282
      %v363 = vpack.c.b16 %v348, %v347
      %v364 = vpack.c.b16 %v350, %v349
      %v365 = vpack.c.b16 %v352, %v351
      %v366 = vpack.c.b16 %v354, %v353
      %v367 = vpack.c.b16 %v356, %v355
      %v368 = vpack.c.b16 %v358, %v357
      %v369 = vpack.c.b16 %v360, %v359
      %v370 = vpack.c.b16 %v362, %v361
      %379 = vmatprep.subr.bf16.mxu0 0
      %380 = vmatpush1.bf16.msra.mxu0 %v370
      %381 = vmatprep.subr.bf16.mxu0 0
      %382 = vmatpush1.bf16.msra.mxu0 %v369
      %383 = vmatprep.subr.bf16.mxu0 0
      %384 = vmatpush1.bf16.msra.mxu0 %v368
      %385 = vmatprep.subr.bf16.mxu0 0
      %386 = vmatpush1.bf16.msra.mxu0 %v367
      %387 = vmatprep.subr.bf16.mxu0 0
      %388 = vmatpush1.bf16.msra.mxu0 %v366
      %389 = vmatprep.subr.bf16.mxu0 0
      %390 = vmatpush1.bf16.msra.mxu0 %v365
      %391 = vmatprep.subr.bf16.mxu0 0
      %392 = vmatpush1.bf16.msra.mxu0 %v364
      %393 = vmatprep.subr.bf16.mxu0 0
      %394 = vmatpush1.bf16.msra.mxu0 %v363
      %395 = vmatprep.subr.bf16.mxu0 0
      %396 = vmatpush2.bf16.msra.mxu0 0
      %397 = vmatprep.subr.bf16.mxu0 0
      %398 = vmatpush2.bf16.msra.mxu0 0
      %399 = vmatprep.subr.bf16.mxu0 0
      %400 = vmatpush2.bf16.msra.mxu0 0
      %401 = vmatprep.subr.bf16.mxu0 0
      %402 = vmatpush2.bf16.msra.mxu0 0
      %403 = vmatprep.subr.bf16.mxu0 0
      %404 = vmatpush2.bf16.msra.mxu0 0
      %405 = vmatprep.subr.bf16.mxu0 0
      %406 = vmatpush2.bf16.msra.mxu0 0
      %407 = vmatprep.subr.bf16.mxu0 0
      %408 = vmatpush2.bf16.msra.mxu0 0
      %409 = vmatprep.subr.bf16.mxu0 0
      %410 = vmatpush2.bf16.msra.mxu0 0
      %411 = vmatprep.mubr.bf16.mxu0 0
      %412 = vmatmul.mubr.bf16.gmra.mxu0 %v315
      %v413 = vpop.f32.mrf.mxu0
      %v414 = vadd.f32 0.0, %v413
      %v415 = vpop.f32.mrf.mxu0
      %v416 = vpop.f32.mrf.mxu0
      %v417 = vadd.f32 0.0, %v416
      %v418 = vpop.f32.mrf.mxu0
      %419 = vmatprep.mubr.bf16.mxu0 0
      %420 = vmatmul.mubr.bf16.gmra.mxu0 %v316
      %v421 = vpop.f32.mrf.mxu0
      %v422 = vadd.f32 0.0, %v421
      %v423 = vpop.f32.mrf.mxu0
      %v424 = vpop.f32.mrf.mxu0
      %v425 = vadd.f32 0.0, %v424
      %v426 = vpop.f32.mrf.mxu0
      %427 = vmatprep.mubr.bf16.mxu0 0
      %428 = vmatmul.mubr.bf16.gmra.mxu0 %v317
      %v429 = vpop.f32.mrf.mxu0
      %v430 = vadd.f32 0.0, %v429
      %v431 = vpop.f32.mrf.mxu0
      %v432 = vpop.f32.mrf.mxu0
      %v433 = vadd.f32 0.0, %v432
      %v434 = vpop.f32.mrf.mxu0
      %435 = vmatprep.mubr.bf16.mxu0 0
      %436 = vmatmul.mubr.bf16.gmra.mxu0 %v318
      %v437 = vpop.f32.mrf.mxu0
      %v438 = vadd.f32 0.0, %v437
      %v439 = vpop.f32.mrf.mxu0
      %v440 = vpop.f32.mrf.mxu0
      %v441 = vadd.f32 0.0, %v440
      %v442 = vpop.f32.mrf.mxu0
      %443 = vmatprep.mubr.bf16.mxu0 0
      %444 = vmatmul.mubr.bf16.gmra.mxu0 %v319
      %v445 = vpop.f32.mrf.mxu0
      %v446 = vadd.f32 0.0, %v445
      %v447 = vpop.f32.mrf.mxu0
      %v448 = vpop.f32.mrf.mxu0
      %v449 = vadd.f32 0.0, %v448
      %v450 = vpop.f32.mrf.mxu0
      %451 = vmatprep.mubr.bf16.mxu0 0
      %452 = vmatmul.mubr.bf16.gmra.mxu0 %v320
      %v453 = vpop.f32.mrf.mxu0
      %v454 = vadd.f32 0.0, %v453
      %v455 = vpop.f32.mrf.mxu0
      %v456 = vpop.f32.mrf.mxu0
      %v457 = vadd.f32 0.0, %v456
      %v458 = vpop.f32.mrf.mxu0
      %459 = vmatprep.mubr.bf16.mxu0 0
      %460 = vmatmul.mubr.bf16.gmra.mxu0 %v321
      %v461 = vpop.f32.mrf.mxu0
      %v462 = vadd.f32 0.0, %v461
      %v463 = vpop.f32.mrf.mxu0
      %v464 = vpop.f32.mrf.mxu0
      %v465 = vadd.f32 0.0, %v464
      %v466 = vpop.f32.mrf.mxu0
      %467 = vmatprep.mubr.bf16.mxu0 0
      %468 = vmatmul.mubr.bf16.gmra.mxu0 %v322
      %v469 = vpop.f32.mrf.mxu0
      %v470 = vadd.f32 0.0, %v469
      %v471 = vpop.f32.mrf.mxu0
      %v472 = vpop.f32.mrf.mxu0
      %v473 = vadd.f32 0.0, %v472
      %v474 = vpop.f32.mrf.mxu0
      %475 = vdwg.mxu0
      %v476 = vpack.c.bf16 %v417, %v414
      %v477 = vpack.c.bf16 %v425, %v422
      %v478 = vpack.c.bf16 %v433, %v430
      %v479 = vpack.c.bf16 %v441, %v438
      %v480 = vpack.c.bf16 %v449, %v446
      %v481 = vpack.c.bf16 %v457, %v454
      %v482 = vpack.c.bf16 %v465, %v462
      %v483 = vpack.c.bf16 %v473, %v470
      %v484 = vld [vmem:[%s2] sm:$0xf]
      %v485 = vld [vmem:[%s2 + $0x4] sm:$0xf]
      %v486 = vld [vmem:[%s2 + $0x8] sm:$0xf]
      %v487 = vld [vmem:[%s2 + $0xc] sm:$0xf]
      %v488 = vld [vmem:[%s2 + $0x10] sm:$0xf]
      %v489 = vld [vmem:[%s2 + $0x14] sm:$0xf]
      %v490 = vld [vmem:[%s2 + $0x18] sm:$0xf]
      %v491 = vld [vmem:[%s2 + $0x1c] sm:$0xf]
      %v492 = vld [vmem:[%s2 + $0x20] sm:$0xf]
      %v493 = vld [vmem:[%s2 + $0x24] sm:$0xf]
      %v494 = vld [vmem:[%s2 + $0x28] sm:$0xf]
      %v495 = vld [vmem:[%s2 + $0x2c] sm:$0xf]
      %v496 = vld [vmem:[%s2 + $0x30] sm:$0xf]
      %v497 = vld [vmem:[%s2 + $0x34] sm:$0xf]
      %v498 = vld [vmem:[%s2 + $0x38] sm:$0xf]
      %v499 = vld [vmem:[%s2 + $0x3c] sm:$0xf]
      %v516 = vunpack.c.l.b16 %v484
      %v517 = vunpack.c.l.b16 %v485
      %v518 = vunpack.c.l.b16 %v486
      %v519 = vunpack.c.l.b16 %v487
      %v520 = vunpack.c.l.b16 %v488
      %v521 = vunpack.c.l.b16 %v489
      %v522 = vunpack.c.l.b16 %v490
      %v523 = vunpack.c.l.b16 %v491
      %v524 = vunpack.c.l.b16 %v492
      %v525 = vunpack.c.l.b16 %v493
      %v526 = vunpack.c.l.b16 %v494
      %v527 = vunpack.c.l.b16 %v495
      %v528 = vunpack.c.l.b16 %v496
      %v529 = vunpack.c.l.b16 %v497
      %v530 = vunpack.c.l.b16 %v498
      %v531 = vunpack.c.l.b16 %v499
      %v532 = vpack.c.b16 %v517, %v516
      %v533 = vpack.c.b16 %v519, %v518
      %v534 = vpack.c.b16 %v521, %v520
      %v535 = vpack.c.b16 %v523, %v522
      %v536 = vpack.c.b16 %v525, %v524
      %v537 = vpack.c.b16 %v527, %v526
      %v538 = vpack.c.b16 %v529, %v528
      %v539 = vpack.c.b16 %v531, %v530
      %548 = vmatprep.subr.bf16.mxu0 0
      %549 = vmatpush1.bf16.msra.mxu0 %v539
      %550 = vmatprep.subr.bf16.mxu0 0
      %551 = vmatpush1.bf16.msra.mxu0 %v538
      %552 = vmatprep.subr.bf16.mxu0 0
      %553 = vmatpush1.bf16.msra.mxu0 %v537
      %554 = vmatprep.subr.bf16.mxu0 0
      %555 = vmatpush1.bf16.msra.mxu0 %v536
      %556 = vmatprep.subr.bf16.mxu0 0
      %557 = vmatpush1.bf16.msra.mxu0 %v535
      %558 = vmatprep.subr.bf16.mxu0 0
      %559 = vmatpush1.bf16.msra.mxu0 %v534
      %560 = vmatprep.subr.bf16.mxu0 0
      %561 = vmatpush1.bf16.msra.mxu0 %v533
      %562 = vmatprep.subr.bf16.mxu0 0
      %563 = vmatpush1.bf16.msra.mxu0 %v532
      %564 = vmatprep.subr.bf16.mxu0 0
      %565 = vmatpush2.bf16.msra.mxu0 0
      %566 = vmatprep.subr.bf16.mxu0 0
      %567 = vmatpush2.bf16.msra.mxu0 0
      %568 = vmatprep.subr.bf16.mxu0 0
      %569 = vmatpush2.bf16.msra.mxu0 0
      %570 = vmatprep.subr.bf16.mxu0 0
      %571 = vmatpush2.bf16.msra.mxu0 0
      %572 = vmatprep.subr.bf16.mxu0 0
      %573 = vmatpush2.bf16.msra.mxu0 0
      %574 = vmatprep.subr.bf16.mxu0 0
      %575 = vmatpush2.bf16.msra.mxu0 0
      %576 = vmatprep.subr.bf16.mxu0 0
      %577 = vmatpush2.bf16.msra.mxu0 0
      %578 = vmatprep.subr.bf16.mxu0 0
      %579 = vmatpush2.bf16.msra.mxu0 0
      %580 = vmatprep.mubr.bf16.mxu0 0
      %581 = vmatmul.mubr.bf16.gmra.mxu0 %v476
      %v582 = vpop.f32.mrf.mxu0
      %v583 = vadd.f32 0.0, %v582
      %v584 = vpop.f32.mrf.mxu0
      %v585 = vpop.f32.mrf.mxu0
      %v586 = vadd.f32 0.0, %v585
      %v587 = vpop.f32.mrf.mxu0
      %588 = vmatprep.mubr.bf16.mxu0 0
      %589 = vmatmul.mubr.bf16.gmra.mxu0 %v477
      %v590 = vpop.f32.mrf.mxu0
      %v591 = vadd.f32 0.0, %v590
      %v592 = vpop.f32.mrf.mxu0
      %v593 = vpop.f32.mrf.mxu0
      %v594 = vadd.f32 0.0, %v593
      %v595 = vpop.f32.mrf.mxu0
      %596 = vmatprep.mubr.bf16.mxu0 0
      %597 = vmatmul.mubr.bf16.gmra.mxu0 %v478
      %v598 = vpop.f32.mrf.mxu0
      %v599 = vadd.f32 0.0, %v598
      %v600 = vpop.f32.mrf.mxu0
      %v601 = vpop.f32.mrf.mxu0
      %v602 = vadd.f32 0.0, %v601
      %v603 = vpop.f32.mrf.mxu0
      %604 = vmatprep.mubr.bf16.mxu0 0
      %605 = vmatmul.mubr.bf16.gmra.mxu0 %v479
      %v606 = vpop.f32.mrf.mxu0
      %v607 = vadd.f32 0.0, %v606
      %v608 = vpop.f32.mrf.mxu0
      %v609 = vpop.f32.mrf.mxu0
      %v610 = vadd.f32 0.0, %v609
      %v611 = vpop.f32.mrf.mxu0
      %612 = vmatprep.mubr.bf16.mxu0 0
      %613 = vmatmul.mubr.bf16.gmra.mxu0 %v480
      %v614 = vpop.f32.mrf.mxu0
      %v615 = vadd.f32 0.0, %v614
      %v616 = vpop.f32.mrf.mxu0
      %v617 = vpop.f32.mrf.mxu0
      %v618 = vadd.f32 0.0, %v617
      %v619 = vpop.f32.mrf.mxu0
      %620 = vmatprep.mubr.bf16.mxu0 0
      %621 = vmatmul.mubr.bf16.gmra.mxu0 %v481
      %v622 = vpop.f32.mrf.mxu0
      %v623 = vadd.f32 0.0, %v622
      %v624 = vpop.f32.mrf.mxu0
      %v625 = vpop.f32.mrf.mxu0
      %v626 = vadd.f32 0.0, %v625
      %v627 = vpop.f32.mrf.mxu0
      %628 = vmatprep.mubr.bf16.mxu0 0
      %629 = vmatmul.mubr.bf16.gmra.mxu0 %v482
      %v630 = vpop.f32.mrf.mxu0
      %v631 = vadd.f32 0.0, %v630
      %v632 = vpop.f32.mrf.mxu0
      %v633 = vpop.f32.mrf.mxu0
      %v634 = vadd.f32 0.0, %v633
      %v635 = vpop.f32.mrf.mxu0
      %636 = vmatprep.mubr.bf16.mxu0 0
      %637 = vmatmul.mubr.bf16.gmra.mxu0 %v483
      %v638 = vpop.f32.mrf.mxu0
      %v639 = vadd.f32 0.0, %v638
      %v640 = vpop.f32.mrf.mxu0
      %v641 = vpop.f32.mrf.mxu0
      %v642 = vadd.f32 0.0, %v641
      %v643 = vpop.f32.mrf.mxu0
      %644 = vdwg.mxu0
      %v645 = vpack.c.bf16 %v586, %v583
      %v646 = vpack.c.bf16 %v594, %v591
      %v647 = vpack.c.bf16 %v602, %v599
      %v648 = vpack.c.bf16 %v610, %v607
      %v649 = vpack.c.bf16 %v618, %v615
      %v650 = vpack.c.bf16 %v626, %v623
      %v651 = vpack.c.bf16 %v634, %v631
      %v652 = vpack.c.bf16 %v642, %v639
      %v653 = vld [vmem:[%s3] sm:$0xf]
      %v654 = vld [vmem:[%s3 + $0x4] sm:$0xf]
      %v655 = vld [vmem:[%s3 + $0x8] sm:$0xf]
      %v656 = vld [vmem:[%s3 + $0xc] sm:$0xf]
      %v657 = vld [vmem:[%s3 + $0x10] sm:$0xf]
      %v658 = vld [vmem:[%s3 + $0x14] sm:$0xf]
      %v659 = vld [vmem:[%s3 + $0x18] sm:$0xf]
      %v660 = vld [vmem:[%s3 + $0x1c] sm:$0xf]
      %v661 = vld [vmem:[%s3 + $0x20] sm:$0xf]
      %v662 = vld [vmem:[%s3 + $0x24] sm:$0xf]
      %v663 = vld [vmem:[%s3 + $0x28] sm:$0xf]
      %v664 = vld [vmem:[%s3 + $0x2c] sm:$0xf]
      %v665 = vld [vmem:[%s3 + $0x30] sm:$0xf]
      %v666 = vld [vmem:[%s3 + $0x34] sm:$0xf]
      %v667 = vld [vmem:[%s3 + $0x38] sm:$0xf]
      %v668 = vld [vmem:[%s3 + $0x3c] sm:$0xf]
      %v685 = vunpack.c.l.b16 %v653
      %v686 = vunpack.c.l.b16 %v654
      %v687 = vunpack.c.l.b16 %v655
      %v688 = vunpack.c.l.b16 %v656
      %v689 = vunpack.c.l.b16 %v657
      %v690 = vunpack.c.l.b16 %v658
      %v691 = vunpack.c.l.b16 %v659
      %v692 = vunpack.c.l.b16 %v660
      %v693 = vunpack.c.l.b16 %v661
      %v694 = vunpack.c.l.b16 %v662
      %v695 = vunpack.c.l.b16 %v663
      %v696 = vunpack.c.l.b16 %v664
      %v697 = vunpack.c.l.b16 %v665
      %v698 = vunpack.c.l.b16 %v666
      %v699 = vunpack.c.l.b16 %v667
      %v700 = vunpack.c.l.b16 %v668
      %v701 = vpack.c.b16 %v686, %v685
      %v702 = vpack.c.b16 %v688, %v687
      %v703 = vpack.c.b16 %v690, %v689
      %v704 = vpack.c.b16 %v692, %v691
      %v705 = vpack.c.b16 %v694, %v693
      %v706 = vpack.c.b16 %v696, %v695
      %v707 = vpack.c.b16 %v698, %v697
      %v708 = vpack.c.b16 %v700, %v699
      %717 = vmatprep.subr.bf16.mxu0 0
      %718 = vmatpush1.bf16.msra.mxu0 %v708
      %719 = vmatprep.subr.bf16.mxu0 0
      %720 = vmatpush1.bf16.msra.mxu0 %v707
      %721 = vmatprep.subr.bf16.mxu0 0
      %722 = vmatpush1.bf16.msra.mxu0 %v706
      %723 = vmatprep.subr.bf16.mxu0 0
      %724 = vmatpush1.bf16.msra.mxu0 %v705
      %725 = vmatprep.subr.bf16.mxu0 0
      %726 = vmatpush1.bf16.msra.mxu0 %v704
      %727 = vmatprep.subr.bf16.mxu0 0
      %728 = vmatpush1.bf16.msra.mxu0 %v703
      %729 = vmatprep.subr.bf16.mxu0 0
      %730 = vmatpush1.bf16.msra.mxu0 %v702
      %731 = vmatprep.subr.bf16.mxu0 0
      %732 = vmatpush1.bf16.msra.mxu0 %v701
      %733 = vmatprep.subr.bf16.mxu0 0
      %734 = vmatpush2.bf16.msra.mxu0 0
      %735 = vmatprep.subr.bf16.mxu0 0
      %736 = vmatpush2.bf16.msra.mxu0 0
      %737 = vmatprep.subr.bf16.mxu0 0
      %738 = vmatpush2.bf16.msra.mxu0 0
      %739 = vmatprep.subr.bf16.mxu0 0
      %740 = vmatpush2.bf16.msra.mxu0 0
      %741 = vmatprep.subr.bf16.mxu0 0
      %742 = vmatpush2.bf16.msra.mxu0 0
      %743 = vmatprep.subr.bf16.mxu0 0
      %744 = vmatpush2.bf16.msra.mxu0 0
      %745 = vmatprep.subr.bf16.mxu0 0
      %746 = vmatpush2.bf16.msra.mxu0 0
      %747 = vmatprep.subr.bf16.mxu0 0
      %748 = vmatpush2.bf16.msra.mxu0 0
      %749 = vmatprep.mubr.bf16.mxu0 0
      %750 = vmatmul.mubr.bf16.gmra.mxu0 %v645
      %v751 = vpop.f32.mrf.mxu0
      %v752 = vadd.f32 0.0, %v751
      %v753 = vpop.f32.mrf.mxu0
      %v754 = vpop.f32.mrf.mxu0
      %v755 = vadd.f32 0.0, %v754
      %v756 = vpop.f32.mrf.mxu0
      %757 = vmatprep.mubr.bf16.mxu0 0
      %758 = vmatmul.mubr.bf16.gmra.mxu0 %v646
      %v759 = vpop.f32.mrf.mxu0
      %v760 = vadd.f32 0.0, %v759
      %v761 = vpop.f32.mrf.mxu0
      %v762 = vpop.f32.mrf.mxu0
      %v763 = vadd.f32 0.0, %v762
      %v764 = vpop.f32.mrf.mxu0
      %765 = vmatprep.mubr.bf16.mxu0 0
      %766 = vmatmul.mubr.bf16.gmra.mxu0 %v647
      %v767 = vpop.f32.mrf.mxu0
      %v768 = vadd.f32 0.0, %v767
      %v769 = vpop.f32.mrf.mxu0
      %v770 = vpop.f32.mrf.mxu0
      %v771 = vadd.f32 0.0, %v770
      %v772 = vpop.f32.mrf.mxu0
      %773 = vmatprep.mubr.bf16.mxu0 0
      %774 = vmatmul.mubr.bf16.gmra.mxu0 %v648
      %v775 = vpop.f32.mrf.mxu0
      %v776 = vadd.f32 0.0, %v775
      %v777 = vpop.f32.mrf.mxu0
      %v778 = vpop.f32.mrf.mxu0
      %v779 = vadd.f32 0.0, %v778
      %v780 = vpop.f32.mrf.mxu0
      %781 = vmatprep.mubr.bf16.mxu0 0
      %782 = vmatmul.mubr.bf16.gmra.mxu0 %v649
      %v783 = vpop.f32.mrf.mxu0
      %v784 = vadd.f32 0.0, %v783
      %v785 = vpop.f32.mrf.mxu0
      %v786 = vpop.f32.mrf.mxu0
      %v787 = vadd.f32 0.0, %v786
      %v788 = vpop.f32.mrf.mxu0
      %789 = vmatprep.mubr.bf16.mxu0 0
      %790 = vmatmul.mubr.bf16.gmra.mxu0 %v650
      %v791 = vpop.f32.mrf.mxu0
      %v792 = vadd.f32 0.0, %v791
      %v793 = vpop.f32.mrf.mxu0
      %v794 = vpop.f32.mrf.mxu0
      %v795 = vadd.f32 0.0, %v794
      %v796 = vpop.f32.mrf.mxu0
      %797 = vmatprep.mubr.bf16.mxu0 0
      %798 = vmatmul.mubr.bf16.gmra.mxu0 %v651
      %v799 = vpop.f32.mrf.mxu0
      %v800 = vadd.f32 0.0, %v799
      %v801 = vpop.f32.mrf.mxu0
      %v802 = vpop.f32.mrf.mxu0
      %v803 = vadd.f32 0.0, %v802
      %v804 = vpop.f32.mrf.mxu0
      %805 = vmatprep.mubr.bf16.mxu0 0
      %806 = vmatmul.mubr.bf16.gmra.mxu0 %v652
      %v807 = vpop.f32.mrf.mxu0
      %v808 = vadd.f32 0.0, %v807
      %v809 = vpop.f32.mrf.mxu0
      %v810 = vpop.f32.mrf.mxu0
      %v811 = vadd.f32 0.0, %v810
      %v812 = vpop.f32.mrf.mxu0
      %813 = vdwg.mxu0
      %v814 = vmul.f32 %v752, 0.4
      %v815 = vmul.f32 %v755, 0.4
      %v816 = vmul.f32 %v760, 0.4
      %v817 = vmul.f32 %v763, 0.4
      %v818 = vmul.f32 %v768, 0.4
      %v819 = vmul.f32 %v771, 0.4
      %v820 = vmul.f32 %v776, 0.4
      %v821 = vmul.f32 %v779, 0.4
      %v822 = vmul.f32 %v784, 0.4
      %v823 = vmul.f32 %v787, 0.4
      %v824 = vmul.f32 %v792, 0.4
      %v825 = vmul.f32 %v795, 0.4
      %v826 = vmul.f32 %v800, 0.4
      %v827 = vmul.f32 %v803, 0.4
      %v828 = vmul.f32 %v808, 0.4
      %v829 = vmul.f32 %v811, 0.4
      %v830 = vld [vmem:[%s242] sm:$0xff]
      %v831 = vld [vmem:[%s242 + $0x8] sm:$0xff]
      %v832 = vld [vmem:[%s242 + $0x10] sm:$0xff]
      %v833 = vld [vmem:[%s242 + $0x18] sm:$0xff]
      %v834 = vld [vmem:[%s242 + $0x20] sm:$0xff]
      %v835 = vld [vmem:[%s242 + $0x28] sm:$0xff]
      %v836 = vld [vmem:[%s242 + $0x30] sm:$0xff]
      %v837 = vld [vmem:[%s242 + $0x38] sm:$0xff]
      %v838 = vld [vmem:[%s242 + $0x40] sm:$0xff]
      %v839 = vld [vmem:[%s242 + $0x48] sm:$0xff]
      %v840 = vld [vmem:[%s242 + $0x50] sm:$0xff]
      %v841 = vld [vmem:[%s242 + $0x58] sm:$0xff]
      %v842 = vld [vmem:[%s242 + $0x60] sm:$0xff]
      %v843 = vld [vmem:[%s242 + $0x68] sm:$0xff]
      %v844 = vld [vmem:[%s242 + $0x70] sm:$0xff]
      %v845 = vld [vmem:[%s242 + $0x78] sm:$0xff]
      %v846 = vmul.f32 %v830, 0.6
      %v847 = vmul.f32 %v831, 0.6
      %v848 = vmul.f32 %v832, 0.6
      %v849 = vmul.f32 %v833, 0.6
      %v850 = vmul.f32 %v834, 0.6
      %v851 = vmul.f32 %v835, 0.6
      %v852 = vmul.f32 %v836, 0.6
      %v853 = vmul.f32 %v837, 0.6
      %v854 = vmul.f32 %v838, 0.6
      %v855 = vmul.f32 %v839, 0.6
      %v856 = vmul.f32 %v840, 0.6
      %v857 = vmul.f32 %v841, 0.6
      %v858 = vmul.f32 %v842, 0.6
      %v859 = vmul.f32 %v843, 0.6
      %v860 = vmul.f32 %v844, 0.6
      %v861 = vmul.f32 %v845, 0.6
      %v862 = vadd.f32 %v814, %v846
      %v863 = vadd.f32 %v815, %v847
      %v864 = vadd.f32 %v816, %v848
      %v865 = vadd.f32 %v817, %v849
      %v866 = vadd.f32 %v818, %v850
      %v867 = vadd.f32 %v819, %v851
      %v868 = vadd.f32 %v820, %v852
      %v869 = vadd.f32 %v821, %v853
      %v870 = vadd.f32 %v822, %v854
      %v871 = vadd.f32 %v823, %v855
      %v872 = vadd.f32 %v824, %v856
      %v873 = vadd.f32 %v825, %v857
      %v874 = vadd.f32 %v826, %v858
      %v875 = vadd.f32 %v827, %v859
      %v876 = vadd.f32 %v828, %v860
      %v877 = vadd.f32 %v829, %v861
      %878 = vst [vmem:[%s248] sm:$0xff] %v862
      %879 = vst [vmem:[%s248 + $0x8] sm:$0xff] %v863
      %880 = vst [vmem:[%s248 + $0x10] sm:$0xff] %v864
      %881 = vst [vmem:[%s248 + $0x18] sm:$0xff] %v865
      %882 = vst [vmem:[%s248 + $0x20] sm:$0xff] %v866
      %883 = vst [vmem:[%s248 + $0x28] sm:$0xff] %v867
      %884 = vst [vmem:[%s248 + $0x30] sm:$0xff] %v868
      %885 = vst [vmem:[%s248 + $0x38] sm:$0xff] %v869
      %886 = vst [vmem:[%s248 + $0x40] sm:$0xff] %v870
      %887 = vst [vmem:[%s248 + $0x48] sm:$0xff] %v871
      %888 = vst [vmem:[%s248 + $0x50] sm:$0xff] %v872
      %889 = vst [vmem:[%s248 + $0x58] sm:$0xff] %v873
      %890 = vst [vmem:[%s248 + $0x60] sm:$0xff] %v874
      %891 = vst [vmem:[%s248 + $0x68] sm:$0xff] %v875
      %892 = vst [vmem:[%s248 + $0x70] sm:$0xff] %v876
      %893 = vst [vmem:[%s248 + $0x78] sm:$0xff] %v877
      %s894 = smul.u32 16, %s16
      %p895 = scmp.lt.s32.totalorder %s894, 31
      %s896 = scalar_select %p895, %s894, 31
      %s897 = smul.addr %s896, 8
      %s898 = scalar_lea.vmem %s5, %s897
      // Predicated region
      $region41: #{hnm_forward.3} parent=39 // pred_check
        %p899 = pneg %p149
      $region42: #{hnm_forward.3} parent=39 // pred_check_branch
        %901 = sbr.rel (%p899) target = $region44
      $region43: #{hnm_forward.3} parent=39 // pred_region
        %s902 = smul.u32 16, %s16
      $region44: #{hnm_forward.3} parent=39 // pred_fallthru
        _
    $region40: #{hnm_forward.3} parent=5 // pred_fallthru
      _
    %p903 = scmp.le.s32.totalorder 2, %s11
    // Predicated region
    $region45: #{hnm_forward.3} parent=5 // pred_check
      %p904 = pneg %p903
    $region46: #{hnm_forward.3} parent=5 // pred_check_branch
      %906 = sbr.rel (%p904) target = $region48
    $region47: #{hnm_forward.3} parent=5 // pred_region
      %s907 = ssub.s32 %s11, 2
      // Predicated region
      $region49: #{hnm_forward.3} parent=47 // pred_check
        %p908 = pneg %p155
      $region50: #{hnm_forward.3} parent=47 // pred_check_branch
        %910 = sbr.rel (%p908) target = $region52
      $region51: #{hnm_forward.3} parent=47 // pred_region
        %s911 = smul.u32 16, %s17
        %p912 = scmp.lt.s32.totalorder %s911, 31
        %s913 = scalar_select %p912, %s911, 31
        %s914 = smul.addr %s913, 8
        %s915 = scalar_lea.vmem %s5, %s914
      $region52: #{hnm_forward.3} parent=47 // pred_fallthru
        _
    $region48: #{hnm_forward.3} parent=5 // pred_fallthru
      _
  $region6: #{hnm_forward.3} parent=0 // loop_footer
    %s15 = sadd.s32 1, %s11
  $region7: #{hnm_forward.3} parent=0 // loop_footer_branch
    %10 = sbr.rel target = $region3
  $region8: #{hnm_forward.3} parent=0 // loop_exit
    _

// kernel: hnm_forward.2
$region0: #{hnm_forward.2}
  #allocation0 [shape = 'u32[]', space=smem, size = 0x4, offset = 0x4, fixed_abs, tag = 'smem constant byte address 0x4 - core index']
  #allocation1 [shape = 'u32[144,128]{1,0:T(1,128)}', space=vmem, size = 0x12000, scoped, tag = 'internal scratch']
  #allocation2 [shape = 'f32[128,128]{1,0:T(8,128)}', space=vmem, size = 0x10000, scoped, tag = 'scratch operand']
  %s0 = inlined_call_operand.vmem [shape: bf16[128,256], index: 0, kind: input, shape index: {}]
  %s1 = inlined_call_operand.vmem [shape: bf16[256,256], index: 1, kind: input, shape index: {}]
  %s2 = inlined_call_operand.vmem [shape: bf16[256,128], index: 2, kind: input, shape index: {}]
  %s3 = inlined_call_operand.vmem [shape: bf16[128,128], index: 3, kind: input, shape index: {}]
  %s4 = inlined_call_operand.vmem [shape: f32[128,128], index: 4, kind: input, shape index: {}]
  %s5 = inlined_call_operand.vmem [shape: f32[128,128], index: 5, kind: input, shape index: {}]
  %s6 = inlined_call_operand.vmem [shape: f32[128,128], index: 6, kind: input, shape index: {}]
  %s7 = inlined_call_operand.vmem [shape: f32[128,128], index: 7, kind: output, shape index: {0}]
  %s8 = inlined_call_operand.vmem [shape: bf16[128,128], index: 8, kind: output, shape index: {1}]
  %s9 = inlined_call_operand.hbm [shape: f32[1,1], index: 9, kind: output, shape index: {2}]
  %10 = xla_tuple %s7, %s8, %s9
  %s11 = sld [smem:[#allocation0]]
  $region167: #{hnm_forward.2} parent=0
    _
  %s13 = ssub.s32 1, %s11
  %s14 = scalar_select 0, %s13, %s11
  $region1: #{hnm_forward.2} parent=0
    #allocation3 [shape = 'u8[65536]{0}', space=vmem, size = 0x10000, scoped, tag = 'input window, operand 0']
    #allocation4 [shape = 'u8[65536]{0}', space=vmem, size = 0x10000, scoped, tag = 'input window, operand 1']
    #allocation5 [shape = 'u8[512]{0}', space=vmem, size = 0x400, scoped, tag = 'output window, operand 2, single buffered']
    #allocation6 [shape = 's32[2]{0}', space=sflag, size = 0x8, scoped, tag = 'scoped memory for hnm_forward.2']
    %15 = vsyncpa [#allocation6], 0
    loop: start=0, step=1, limit=6
    $region2: #{hnm_forward.2} parent=1 // loop_pre_header
      _
    $region3: #{hnm_forward.2} parent=1 // loop_header
      %s17 = sphi 0, %s21
      %p18 = scmp.ge.s32.totalorder %s17, 6
      %s24 = sphi 0, %s36
      %s25 = sphi 0, %s32
      %s26 = sphi 0, %s24
      %s27 = sphi 0, %s25
      %s28 = sphi 0, %s26
      %s29 = sphi 0, %s27
      %s39 = sphi 0, %s41
      %s42 = sphi 0, %s39
      %s43 = sphi 0, %s42
      %s59 = sphi 0, %s43
      %s67 = sphi 0, %s69
      %s70 = sphi 0, %s67
      %s71 = sphi 0, %s70
      %s87 = sphi 0, %s71
      %s93 = sphi 0, %s95
      %s96 = sphi 0, %s93
      %s97 = sphi 0, %s96
      %s113 = sphi 0, %s97
      %s117 = sphi 0, %s117
      %s119 = sphi 0, %s117
      %s120 = sphi 0, %s119
      %s134 = sphi 0, %s120
      %s138 = sphi 0, %s138
      %s140 = sphi 0, %s138
      %s141 = sphi 0, %s140
      %s155 = sphi 0, %s141
      %s159 = sphi 0, %s159
      %s161 = sphi 0, %s159
      %s162 = sphi 0, %s161
      %s176 = sphi 0, %s162
      %s180 = sphi 0, %s180
      %s182 = sphi 0, %s180
      %s183 = sphi 0, %s182
      %s197 = sphi 0, %s183
      %s201 = sphi 0, %s201
      %s203 = sphi 0, %s201
      %s204 = sphi 0, %s203
      %s218 = sphi 0, %s204
      %s222 = sphi 0, %s222
      %s224 = sphi 0, %s222
      %s225 = sphi 0, %s224
      %s239 = sphi 0, %s225
      %s243 = sphi 0, %s243
      %s245 = sphi 0, %s243
      %s246 = sphi 0, %s245
      %s260 = sphi 0, %s246
    $region4: #{hnm_forward.2} parent=1 // loop_header_branch
      %20 = sbr.rel (%p18) target = $region8
    $region5: #{hnm_forward.2} parent=1 // loop_body
      %s22 = ssub.s32 %s17, 1
      %s23 = ssub.s32 %s17, 2
      %s30 = sadd.s32 1, %s25
      %p31 = scmp.ge.s32.totalorder %s30, 2
      %s32 = scalar_select %p31, 0, %s30
      %s33 = sadd.s32 1, %s24
      %s34 = scalar_select %p31, %s33, %s24
      %p35 = scmp.ge.s32.totalorder %s34, 2
      %s36 = scalar_select %p35, 0, %s34
      %s37 = ssub.s32 %s24, %s36
      %p38 = scmp.eq.s32.totalorder %s37, 0
      %s40 = sadd.s32 %s39, 1
      %s41 = scalar_select %p38, %s39, %s40
      %p44 = pneg %p38
      %p45 = scmp.eq.s32.totalorder %s17, 3
      %p46 = por %p44, %p45
      %p47 = scmp.ne.s32.totalorder %s39, %s42
      %p48 = scmp.eq.s32.totalorder %s17, 0
      %p49 = por %p47, %p48
      %p50 = scmp.ne.s32.totalorder %s39, %s42
      %p51 = scmp.eq.s32.totalorder %s22, 3
      %p52 = por %p50, %p51
      %p53 = scmp.ne.s32.totalorder %s42, %s43
      %p54 = scmp.eq.s32.totalorder %s22, 0
      %p55 = por %p53, %p54
      %p56 = scmp.ne.s32.totalorder %s42, %s43
      %p57 = scmp.eq.s32.totalorder %s23, 3
      %p58 = por %p56, %p57
      %p60 = scmp.ne.s32.totalorder %s43, %s59
      %p61 = scmp.eq.s32.totalorder %s23, 0
      %p62 = por %p60, %p61
      %s63 = ssub.s32 %s24, %s36
      %s64 = ssub.s32 %s25, %s32
      %s65 = sor.u32 %s63, %s64
      %p66 = scmp.eq.s32.totalorder %s65, 0
      %s68 = sadd.s32 %s67, 1
      %s69 = scalar_select %p66, %s67, %s68
      %p72 = pneg %p66
      %p73 = scmp.eq.s32.totalorder %s17, 3
      %p74 = por %p72, %p73
      %p75 = scmp.ne.s32.totalorder %s67, %s70
      %p76 = scmp.eq.s32.totalorder %s17, 0
      %p77 = por %p75, %p76
      %p78 = scmp.ne.s32.totalorder %s67, %s70
      %p79 = scmp.eq.s32.totalorder %s22, 3
      %p80 = por %p78, %p79
      %p81 = scmp.ne.s32.totalorder %s70, %s71
      %p82 = scmp.eq.s32.totalorder %s22, 0
      %p83 = por %p81, %p82
      %p84 = scmp.ne.s32.totalorder %s70, %s71
      %p85 = scmp.eq.s32.totalorder %s23, 3
      %p86 = por %p84, %p85
      %p88 = scmp.ne.s32.totalorder %s71, %s87
      %p89 = scmp.eq.s32.totalorder %s23, 0
      %p90 = por %p88, %p89
      %s91 = ssub.s32 %s25, %s32
      %p92 = scmp.eq.s32.totalorder %s91, 0
      %s94 = sadd.s32 %s93, 1
      %s95 = scalar_select %p92, %s93, %s94
      %p98 = pneg %p92
      %p99 = scmp.eq.s32.totalorder %s17, 3
      %p100 = por %p98, %p99
      %p101 = scmp.ne.s32.totalorder %s93, %s96
      %p102 = scmp.eq.s32.totalorder %s17, 0
      %p103 = por %p101, %p102
      %p104 = scmp.ne.s32.totalorder %s93, %s96
      %p105 = scmp.eq.s32.totalorder %s22, 3
      %p106 = por %p104, %p105
      %p107 = scmp.ne.s32.totalorder %s96, %s97
      %p108 = scmp.eq.s32.totalorder %s22, 0
      %p109 = por %p107, %p108
      %p110 = scmp.ne.s32.totalorder %s96, %s97
      %p111 = scmp.eq.s32.totalorder %s23, 3
      %p112 = por %p110, %p111
      %p114 = scmp.ne.s32.totalorder %s97, %s113
      %p115 = scmp.eq.s32.totalorder %s23, 0
      %p116 = por %p114, %p115
      %s118 = sadd.s32 %s117, 1
      %p121 = scmp.eq.s32.totalorder %s17, 3
      %p122 = scmp.ne.s32.totalorder %s117, %s119
      %p123 = scmp.eq.s32.totalorder %s17, 0
      %p124 = por %p122, %p123
      %p125 = scmp.ne.s32.totalorder %s117, %s119
      %p126 = scmp.eq.s32.totalorder %s22, 3
      %p127 = por %p125, %p126
      %p128 = scmp.ne.s32.totalorder %s119, %s120
      %p129 = scmp.eq.s32.totalorder %s22, 0
      %p130 = por %p128, %p129
      %p131 = scmp.ne.s32.totalorder %s119, %s120
      %p132 = scmp.eq.s32.totalorder %s23, 3
      %p133 = por %p131, %p132
      %p135 = scmp.ne.s32.totalorder %s120, %s134
      %p136 = scmp.eq.s32.totalorder %s23, 0
      %p137 = por %p135, %p136
      %s139 = sadd.s32 %s138, 1
      %p142 = scmp.eq.s32.totalorder %s17, 3
      %p143 = scmp.ne.s32.totalorder %s138, %s140
      %p144 = scmp.eq.s32.totalorder %s17, 0
      %p145 = por %p143, %p144
      %p146 = scmp.ne.s32.totalorder %s138, %s140
      %p147 = scmp.eq.s32.totalorder %s22, 3
      %p148 = por %p146, %p147
      %p149 = scmp.ne.s32.totalorder %s140, %s141
      %p150 = scmp.eq.s32.totalorder %s22, 0
      %p151 = por %p149, %p150
      %p152 = scmp.ne.s32.totalorder %s140, %s141
      %p153 = scmp.eq.s32.totalorder %s23, 3
      %p154 = por %p152, %p153
      %p156 = scmp.ne.s32.totalorder %s141, %s155
      %p157 = scmp.eq.s32.totalorder %s23, 0
      %p158 = por %p156, %p157
      %s160 = sadd.s32 %s159, 1
      %p163 = scmp.eq.s32.totalorder %s17, 3
      %p164 = scmp.ne.s32.totalorder %s159, %s161
      %p165 = scmp.eq.s32.totalorder %s17, 0
      %p166 = por %p164, %p165
      %p167 = scmp.ne.s32.totalorder %s159, %s161
      %p168 = scmp.eq.s32.totalorder %s22, 3
      %p169 = por %p167, %p168
      %p170 = scmp.ne.s32.totalorder %s161, %s162
      %p171 = scmp.eq.s32.totalorder %s22, 0
      %p172 = por %p170, %p171
      %p173 = scmp.ne.s32.totalorder %s161, %s162
      %p174 = scmp.eq.s32.totalorder %s23, 3
      %p175 = por %p173, %p174
      %p177 = scmp.ne.s32.totalorder %s162, %s176
      %p178 = scmp.eq.s32.totalorder %s23, 0
      %p179 = por %p177, %p178
      %s181 = sadd.s32 %s180, 1
      %p184 = scmp.eq.s32.totalorder %s17, 3
      %p185 = scmp.ne.s32.totalorder %s180, %s182
      %p186 = scmp.eq.s32.totalorder %s17, 0
      %p187 = por %p185, %p186
      %p188 = scmp.ne.s32.totalorder %s180, %s182
      %p189 = scmp.eq.s32.totalorder %s22, 3
      %p190 = por %p188, %p189
      %p191 = scmp.ne.s32.totalorder %s182, %s183
      %p192 = scmp.eq.s32.totalorder %s22, 0
      %p193 = por %p191, %p192
      %p194 = scmp.ne.s32.totalorder %s182, %s183
      %p195 = scmp.eq.s32.totalorder %s23, 3
      %p196 = por %p194, %p195
      %p198 = scmp.ne.s32.totalorder %s183, %s197
      %p199 = scmp.eq.s32.totalorder %s23, 0
      %p200 = por %p198, %p199
      %s202 = sadd.s32 %s201, 1
      %p205 = scmp.eq.s32.totalorder %s17, 3
      %p206 = scmp.ne.s32.totalorder %s201, %s203
      %p207 = scmp.eq.s32.totalorder %s17, 0
      %p208 = por %p206, %p207
      %p209 = scmp.ne.s32.totalorder %s201, %s203
      %p210 = scmp.eq.s32.totalorder %s22, 3
      %p211 = por %p209, %p210
      %p212 = scmp.ne.s32.totalorder %s203, %s204
      %p213 = scmp.eq.s32.totalorder %s22, 0
      %p214 = por %p212, %p213
      %p215 = scmp.ne.s32.totalorder %s203, %s204
      %p216 = scmp.eq.s32.totalorder %s23, 3
      %p217 = por %p215, %p216
      %p219 = scmp.ne.s32.totalorder %s204, %s218
      %p220 = scmp.eq.s32.totalorder %s23, 0
      %p221 = por %p219, %p220
      %s223 = sadd.s32 %s222, 1
      %p226 = scmp.eq.s32.totalorder %s17, 3
      %p227 = scmp.ne.s32.totalorder %s222, %s224
      %p228 = scmp.eq.s32.totalorder %s17, 0
      %p229 = por %p227, %p228
      %p230 = scmp.ne.s32.totalorder %s222, %s224
      %p231 = scmp.eq.s32.totalorder %s22, 3
      %p232 = por %p230, %p231
      %p233 = scmp.ne.s32.totalorder %s224, %s225
      %p234 = scmp.eq.s32.totalorder %s22, 0
      %p235 = por %p233, %p234
      %p236 = scmp.ne.s32.totalorder %s224, %s225
      %p237 = scmp.eq.s32.totalorder %s23, 3
      %p238 = por %p236, %p237
      %p240 = scmp.ne.s32.totalorder %s225, %s239
      %p241 = scmp.eq.s32.totalorder %s23, 0
      %p242 = por %p240, %p241
      %s244 = sadd.s32 %s243, 1
      %p247 = scmp.eq.s32.totalorder %s17, 3
      %p248 = scmp.ne.s32.totalorder %s243, %s245
      %p249 = scmp.eq.s32.totalorder %s17, 0
      %p250 = por %p248, %p249
      %p251 = scmp.ne.s32.totalorder %s243, %s245
      %p252 = scmp.eq.s32.totalorder %s22, 3
      %p253 = por %p251, %p252
      %p254 = scmp.ne.s32.totalorder %s245, %s246
      %p255 = scmp.eq.s32.totalorder %s22, 0
      %p256 = por %p254, %p255
      %p257 = scmp.ne.s32.totalorder %s245, %s246
      %p258 = scmp.eq.s32.totalorder %s23, 3
      %p259 = por %p257, %p258
      %p261 = scmp.ne.s32.totalorder %s246, %s260
      %p262 = scmp.eq.s32.totalorder %s23, 0
      %p263 = por %p261, %p262
      %p264 = scmp.le.s32.totalorder 1, %s17
      %p265 = scmp.lt.s32.totalorder %s17, 5
      %p266 = pnand %p264, %p265
      %p267 = pneg %p266
      // Predicated region
      $region9: #{hnm_forward.2} parent=5 // pred_check
        _
      $region10: #{hnm_forward.2} parent=5 // pred_check_branch
        %269 = sbr.rel (%p266) target = $region12
      $region11: #{hnm_forward.2} parent=5 // pred_region
        %s270 = ssub.s32 %s17, 1
        // Predicated region
        $region13: #{hnm_forward.2} parent=11 // pred_check
          %p271 = pneg %p130
        $region14: #{hnm_forward.2} parent=11 // pred_check_branch
          %273 = sbr.rel (%p271) target = $region16
        $region15: #{hnm_forward.2} parent=11 // pred_region
          _
        $region16: #{hnm_forward.2} parent=11 // pred_fallthru
          _
        // Predicated region
        $region17: #{hnm_forward.2} parent=11 // pred_check
          %p274 = pneg %p151
        $region18: #{hnm_forward.2} parent=11 // pred_check_branch
          %276 = sbr.rel (%p274) target = $region20
        $region19: #{hnm_forward.2} parent=11 // pred_region
          _
        $region20: #{hnm_forward.2} parent=11 // pred_fallthru
          _
        // Predicated region
        $region21: #{hnm_forward.2} parent=11 // pred_check
          %p277 = pneg %p172
        $region22: #{hnm_forward.2} parent=11 // pred_check_branch
          %279 = sbr.rel (%p277) target = $region24
        $region23: #{hnm_forward.2} parent=11 // pred_region
          _
        $region24: #{hnm_forward.2} parent=11 // pred_fallthru
          _
        // Predicated region
        $region25: #{hnm_forward.2} parent=11 // pred_check
          %p280 = pneg %p193
        $region26: #{hnm_forward.2} parent=11 // pred_check_branch
          %282 = sbr.rel (%p280) target = $region28
        $region27: #{hnm_forward.2} parent=11 // pred_region
          _
        $region28: #{hnm_forward.2} parent=11 // pred_fallthru
          _
      $region12: #{hnm_forward.2} parent=5 // pred_fallthru
        _
      %p283 = scmp.lt.s32.totalorder %s17, 4
      // Predicated region
      $region29: #{hnm_forward.2} parent=5 // pred_check
        %p284 = pneg %p283
      $region30: #{hnm_forward.2} parent=5 // pred_check_branch
        %286 = sbr.rel (%p284) target = $region32
      $region31: #{hnm_forward.2} parent=5 // pred_region
        // Predicated region
        $region33: #{hnm_forward.2} parent=31 // pred_check
          %p287 = pneg %p49
        $region34: #{hnm_forward.2} parent=31 // pred_check_branch
          %289 = sbr.rel (%p287) target = $region36
        $region35: #{hnm_forward.2} parent=31 // pred_region
          %s290 = sand.u32 %s39, 1
          %s291 = sand.u32 %s39, 1
          %s292 = smul.addr %s291, 64
          %s293 = scalar_lea.vmem [#allocation3], %s292
          %s294 = smul.addr %s24, 4
          %s295 = scalar_lea.vmem %s0, %s294
          // Predicated region
          $region37: #{hnm_forward.2} parent=35 // pred_check
            _
          $region38: #{hnm_forward.2} parent=35 // pred_check_branch
            %297 = sbr.rel (0) target = $region40
          $region39: #{hnm_forward.2} parent=35 // pred_region
            // Predicated region
            $region41: #{hnm_forward.2} parent=39 // pred_check
              _
            $region42: #{hnm_forward.2} parent=39 // pred_check_branch
              %299 = sbr.rel target = $region44
            $region43: #{hnm_forward.2} parent=39 // pred_region
              // Predicated region
              $region56: #{hnm_forward.2} parent=43 // pred_check
                _
              $region57: #{hnm_forward.2} parent=43 // pred_check_branch
                %345 = sbr.rel (0) target = $region59
              $region58: #{hnm_forward.2} parent=43 // pred_region
                loop: start=0, step=1, limit=1
                $region60: #{hnm_forward.2} parent=58 // loop_pre_header
                  _
                $region61: #{hnm_forward.2} parent=58 // loop_header
                  %s347 = sphi 0, %s351
                  %p348 = scmp.ge.s32.totalorder %s347, 1
                  %s352 = sphi %s295, %s295
                  %s353 = sphi %s293, %s293
                $region62: #{hnm_forward.2} parent=58 // loop_header_branch
                  %350 = sbr.rel (%p348) target = $region66
                $region63: #{hnm_forward.2} parent=58 // loop_body
                  _
                $region64: #{hnm_forward.2} parent=58 // loop_footer
                  %s351 = sadd.s32 1, %s347
                $region65: #{hnm_forward.2} parent=58 // loop_footer_branch
                  %346 = sbr.rel target = $region61
                $region66: #{hnm_forward.2} parent=58 // loop_exit
                  _
                %s355 = ssub.s32 16, 1
                loop: start=0, step=1, limit=1
                $region67: #{hnm_forward.2} parent=58 // loop_pre_header
                  _
                $region68: #{hnm_forward.2} parent=58 // loop_header
                  %s357 = sphi 0, %s361
                  %p358 = scmp.ge.s32.totalorder %s357, 1
                  %s362 = sphi %s295, %s295
                  %s363 = sphi %s293, %s293
                $region69: #{hnm_forward.2} parent=58 // loop_header_branch
                  %360 = sbr.rel (%p358) target = $region73
                $region70: #{hnm_forward.2} parent=58 // loop_body
                  %v364 = vld [vmem:[%s362] sm:%s355]
                  %365 = vst [vmem:[%s363] sm:%s355] %v364
                  %v366 = vld [vmem:[%s362 + $0x8] sm:%s355]
                  %367 = vst [vmem:[%s363 + $0x4] sm:%s355] %v366
                  %v368 = vld [vmem:[%s362 + $0x10] sm:%s355]
                  %369 = vst [vmem:[%s363 + $0x8] sm:%s355] %v368
                  %v370 = vld [vmem:[%s362 + $0x18] sm:%s355]
                  %371 = vst [vmem:[%s363 + $0xc] sm:%s355] %v370
                  %v372 = vld [vmem:[%s362 + $0x20] sm:%s355]
                  %373 = vst [vmem:[%s363 + $0x10] sm:%s355] %v372
                  %v374 = vld [vmem:[%s362 + $0x28] sm:%s355]
                  %375 = vst [vmem:[%s363 + $0x14] sm:%s355] %v374
                  %v376 = vld [vmem:[%s362 + $0x30] sm:%s355]
                  %377 = vst [vmem:[%s363 + $0x18] sm:%s355] %v376
                  %v378 = vld [vmem:[%s362 + $0x38] sm:%s355]
                  %379 = vst [vmem:[%s363 + $0x1c] sm:%s355] %v378
                  %v380 = vld [vmem:[%s362 + $0x40] sm:%s355]
                  %381 = vst [vmem:[%s363 + $0x20] sm:%s355] %v380
                  %v382 = vld [vmem:[%s362 + $0x48] sm:%s355]
                  %383 = vst [vmem:[%s363 + $0x24] sm:%s355] %v382
                  %v384 = vld [vmem:[%s362 + $0x50] sm:%s355]
                  %385 = vst [vmem:[%s363 + $0x28] sm:%s355] %v384
                  %v386 = vld [vmem:[%s362 + $0x58] sm:%s355]
                  %387 = vst [vmem:[%s363 + $0x2c] sm:%s355] %v386
                  %v388 = vld [vmem:[%s362 + $0x60] sm:%s355]
                  %389 = vst [vmem:[%s363 + $0x30] sm:%s355] %v388
                  %v390 = vld [vmem:[%s362 + $0x68] sm:%s355]
                  %391 = vst [vmem:[%s363 + $0x34] sm:%s355] %v390
                  %v392 = vld [vmem:[%s362 + $0x70] sm:%s355]
                  %393 = vst [vmem:[%s363 + $0x38] sm:%s355] %v392
                  %v394 = vld [vmem:[%s362 + $0x78] sm:%s355]
                  %395 = vst [vmem:[%s363 + $0x3c] sm:%s355] %v394
                $region71: #{hnm_forward.2} parent=58 // loop_footer
                  %s361 = sadd.s32 1, %s357
                $region72: #{hnm_forward.2} parent=58 // loop_footer_branch
                  %356 = sbr.rel target = $region68
                $region73: #{hnm_forward.2} parent=58 // loop_exit
                  _
              $region59: #{hnm_forward.2} parent=43 // pred_fallthru
                _
            $region44: #{hnm_forward.2} parent=39 // pred_fallthru
              _
            // Predicated region
            $region45: #{hnm_forward.2} parent=39 // pred_check
              _
            $region46: #{hnm_forward.2} parent=39 // pred_check_branch
              %301 = sbr.rel (0) target = $region48
            $region47: #{hnm_forward.2} parent=39 // pred_region
              %s303 = ssub.s32 16, 1
              loop: start=0, step=1, limit=1
              $region49: #{hnm_forward.2} parent=47 // loop_pre_header
                _
              $region50: #{hnm_forward.2} parent=47 // loop_header
                %s305 = sphi 0, %s309
                %p306 = scmp.ge.s32.totalorder %s305, 1
                %s310 = sphi %s295, %s295
                %s311 = sphi %s293, %s293
              $region51: #{hnm_forward.2} parent=47 // loop_header_branch
                %308 = sbr.rel (%p306) target = $region55
              $region52: #{hnm_forward.2} parent=47 // loop_body
                %v312 = vld [vmem:[%s310] sm:%s303]
                %313 = vst [vmem:[%s311] sm:%s303] %v312
                %v314 = vld [vmem:[%s310 + $0x8] sm:%s303]
                %315 = vst [vmem:[%s311 + $0x4] sm:%s303] %v314
                %v316 = vld [vmem:[%s310 + $0x10] sm:%s303]
                %317 = vst [vmem:[%s311 + $0x8] sm:%s303] %v316
                %v318 = vld [vmem:[%s310 + $0x18] sm:%s303]
                %319 = vst [vmem:[%s311 + $0xc] sm:%s303] %v318
                %v320 = vld [vmem:[%s310 + $0x20] sm:%s303]
                %321 = vst [vmem:[%s311 + $0x10] sm:%s303] %v320
                %v322 = vld [vmem:[%s310 + $0x28] sm:%s303]
                %323 = vst [vmem:[%s311 + $0x14] sm:%s303] %v322
                %v324 = vld [vmem:[%s310 + $0x30] sm:%s303]
                %325 = vst [vmem:[%s311 + $0x18] sm:%s303] %v324
                %v326 = vld [vmem:[%s310 + $0x38] sm:%s303]
                %327 = vst [vmem:[%s311 + $0x1c] sm:%s303] %v326
                %v328 = vld [vmem:[%s310 + $0x40] sm:%s303]
                %329 = vst [vmem:[%s311 + $0x20] sm:%s303] %v328
                %v330 = vld [vmem:[%s310 + $0x48] sm:%s303]
                %331 = vst [vmem:[%s311 + $0x24] sm:%s303] %v330
                %v332 = vld [vmem:[%s310 + $0x50] sm:%s303]
                %333 = vst [vmem:[%s311 + $0x28] sm:%s303] %v332
                %v334 = vld [vmem:[%s310 + $0x58] sm:%s303]
                %335 = vst [vmem:[%s311 + $0x2c] sm:%s303] %v334
                %v336 = vld [vmem:[%s310 + $0x60] sm:%s303]
                %337 = vst [vmem:[%s311 + $0x30] sm:%s303] %v336
                %v338 = vld [vmem:[%s310 + $0x68] sm:%s303]
                %339 = vst [vmem:[%s311 + $0x34] sm:%s303] %v338
                %v340 = vld [vmem:[%s310 + $0x70] sm:%s303]
                %341 = vst [vmem:[%s311 + $0x38] sm:%s303] %v340
                %v342 = vld [vmem:[%s310 + $0x78] sm:%s303]
                %343 = vst [vmem:[%s311 + $0x3c] sm:%s303] %v342
              $region53: #{hnm_forward.2} parent=47 // loop_footer
                %s309 = sadd.s32 1, %s305
              $region54: #{hnm_forward.2} parent=47 // loop_footer_branch
                %304 = sbr.rel target = $region50
              $region55: #{hnm_forward.2} parent=47 // loop_exit
                _
            $region48: #{hnm_forward.2} parent=39 // pred_fallthru
              _
          $region40: #{hnm_forward.2} parent=35 // pred_fallthru
            _
          %396 = vnop
        $region36: #{hnm_forward.2} parent=31 // pred_fallthru
          _
        // Predicated region
        $region74: #{hnm_forward.2} parent=31 // pred_check
          %p397 = pneg %p77
        $region75: #{hnm_forward.2} parent=31 // pred_check_branch
          %399 = sbr.rel (%p397) target = $region77
        $region76: #{hnm_forward.2} parent=31 // pred_region
          %s400 = sand.u32 %s67, 1
          %s401 = sand.u32 %s67, 1
          %s402 = smul.addr %s401, 64
          %s403 = scalar_lea.vmem [#allocation4], %s402
          %s404 = smul.u32 16, %s24
          %s405 = smul.addr %s404, 2
          %s406 = sadd.s32 %s25, %s405
          %s407 = smul.addr %s406, 4
          %s408 = scalar_lea.vmem %s1, %s407
          // Predicated region
          $region78: #{hnm_forward.2} parent=76 // pred_check
            _
          $region79: #{hnm_forward.2} parent=76 // pred_check_branch
            %410 = sbr.rel (0) target = $region81
          $region80: #{hnm_forward.2} parent=76 // pred_region
            // Predicated region
            $region82: #{hnm_forward.2} parent=80 // pred_check
              _
            $region83: #{hnm_forward.2} parent=80 // pred_check_branch
              %412 = sbr.rel target = $region85
            $region84: #{hnm_forward.2} parent=80 // pred_region
              // Predicated region
              $region97: #{hnm_forward.2} parent=84 // pred_check
                _
              $region98: #{hnm_forward.2} parent=84 // pred_check_branch
                %458 = sbr.rel (0) target = $region100
              $region99: #{hnm_forward.2} parent=84 // pred_region
                loop: start=0, step=1, limit=1
                $region101: #{hnm_forward.2} parent=99 // loop_pre_header
                  _
                $region102: #{hnm_forward.2} parent=99 // loop_header
                  %s460 = sphi 0, %s464
                  %p461 = scmp.ge.s32.totalorder %s460, 1
                  %s465 = sphi %s408, %s408
                  %s466 = sphi %s403, %s403
                $region103: #{hnm_forward.2} parent=99 // loop_header_branch
                  %463 = sbr.rel (%p461) target = $region107
                $region104: #{hnm_forward.2} parent=99 // loop_body
                  _
                $region105: #{hnm_forward.2} parent=99 // loop_footer
                  %s464 = sadd.s32 1, %s460
                $region106: #{hnm_forward.2} parent=99 // loop_footer_branch
                  %459 = sbr.rel target = $region102
                $region107: #{hnm_forward.2} parent=99 // loop_exit
                  _
                %s468 = ssub.s32 16, 1
                loop: start=0, step=1, limit=1
                $region108: #{hnm_forward.2} parent=99 // loop_pre_header
                  _
                $region109: #{hnm_forward.2} parent=99 // loop_header
                  %s470 = sphi 0, %s474
                  %p471 = scmp.ge.s32.totalorder %s470, 1
                  %s475 = sphi %s408, %s408
                  %s476 = sphi %s403, %s403
                $region110: #{hnm_forward.2} parent=99 // loop_header_branch
                  %473 = sbr.rel (%p471) target = $region114
                $region111: #{hnm_forward.2} parent=99 // loop_body
                  %v477 = vld [vmem:[%s475] sm:%s468]
                  %478 = vst [vmem:[%s476] sm:%s468] %v477
                  %v479 = vld [vmem:[%s475 + $0x8] sm:%s468]
                  %480 = vst [vmem:[%s476 + $0x4] sm:%s468] %v479
                  %v481 = vld [vmem:[%s475 + $0x10] sm:%s468]
                  %482 = vst [vmem:[%s476 + $0x8] sm:%s468] %v481
                  %v483 = vld [vmem:[%s475 + $0x18] sm:%s468]
                  %484 = vst [vmem:[%s476 + $0xc] sm:%s468] %v483
                  %v485 = vld [vmem:[%s475 + $0x20] sm:%s468]
                  %486 = vst [vmem:[%s476 + $0x10] sm:%s468] %v485
                  %v487 = vld [vmem:[%s475 + $0x28] sm:%s468]
                  %488 = vst [vmem:[%s476 + $0x14] sm:%s468] %v487
                  %v489 = vld [vmem:[%s475 + $0x30] sm:%s468]
                  %490 = vst [vmem:[%s476 + $0x18] sm:%s468] %v489
                  %v491 = vld [vmem:[%s475 + $0x38] sm:%s468]
                  %492 = vst [vmem:[%s476 + $0x1c] sm:%s468] %v491
                  %v493 = vld [vmem:[%s475 + $0x40] sm:%s468]
                  %494 = vst [vmem:[%s476 + $0x20] sm:%s468] %v493
                  %v495 = vld [vmem:[%s475 + $0x48] sm:%s468]
                  %496 = vst [vmem:[%s476 + $0x24] sm:%s468] %v495
                  %v497 = vld [vmem:[%s475 + $0x50] sm:%s468]
                  %498 = vst [vmem:[%s476 + $0x28] sm:%s468] %v497
                  %v499 = vld [vmem:[%s475 + $0x58] sm:%s468]
                  %500 = vst [vmem:[%s476 + $0x2c] sm:%s468] %v499
                  %v501 = vld [vmem:[%s475 + $0x60] sm:%s468]
                  %502 = vst [vmem:[%s476 + $0x30] sm:%s468] %v501
                  %v503 = vld [vmem:[%s475 + $0x68] sm:%s468]
                  %504 = vst [vmem:[%s476 + $0x34] sm:%s468] %v503
                  %v505 = vld [vmem:[%s475 + $0x70] sm:%s468]
                  %506 = vst [vmem:[%s476 + $0x38] sm:%s468] %v505
                  %v507 = vld [vmem:[%s475 + $0x78] sm:%s468]
                  %508 = vst [vmem:[%s476 + $0x3c] sm:%s468] %v507
                $region112: #{hnm_forward.2} parent=99 // loop_footer
                  %s474 = sadd.s32 1, %s470
                $region113: #{hnm_forward.2} parent=99 // loop_footer_branch
                  %469 = sbr.rel target = $region109
                $region114: #{hnm_forward.2} parent=99 // loop_exit
                  _
              $region100: #{hnm_forward.2} parent=84 // pred_fallthru
                _
            $region85: #{hnm_forward.2} parent=80 // pred_fallthru
              _
            // Predicated region
            $region86: #{hnm_forward.2} parent=80 // pred_check
              _
            $region87: #{hnm_forward.2} parent=80 // pred_check_branch
              %414 = sbr.rel (0) target = $region89
            $region88: #{hnm_forward.2} parent=80 // pred_region
              %s416 = ssub.s32 16, 1
              loop: start=0, step=1, limit=1
              $region90: #{hnm_forward.2} parent=88 // loop_pre_header
                _
              $region91: #{hnm_forward.2} parent=88 // loop_header
                %s418 = sphi 0, %s422
                %p419 = scmp.ge.s32.totalorder %s418, 1
                %s423 = sphi %s408, %s408
                %s424 = sphi %s403, %s403
              $region92: #{hnm_forward.2} parent=88 // loop_header_branch
                %421 = sbr.rel (%p419) target = $region96
              $region93: #{hnm_forward.2} parent=88 // loop_body
                %v425 = vld [vmem:[%s423] sm:%s416]
                %426 = vst [vmem:[%s424] sm:%s416] %v425
                %v427 = vld [vmem:[%s423 + $0x8] sm:%s416]
                %428 = vst [vmem:[%s424 + $0x4] sm:%s416] %v427
                %v429 = vld [vmem:[%s423 + $0x10] sm:%s416]
                %430 = vst [vmem:[%s424 + $0x8] sm:%s416] %v429
                %v431 = vld [vmem:[%s423 + $0x18] sm:%s416]
                %432 = vst [vmem:[%s424 + $0xc] sm:%s416] %v431
                %v433 = vld [vmem:[%s423 + $0x20] sm:%s416]
                %434 = vst [vmem:[%s424 + $0x10] sm:%s416] %v433
                %v435 = vld [vmem:[%s423 + $0x28] sm:%s416]
                %436 = vst [vmem:[%s424 + $0x14] sm:%s416] %v435
                %v437 = vld [vmem:[%s423 + $0x30] sm:%s416]
                %438 = vst [vmem:[%s424 + $0x18] sm:%s416] %v437
                %v439 = vld [vmem:[%s423 + $0x38] sm:%s416]
                %440 = vst [vmem:[%s424 + $0x1c] sm:%s416] %v439
                %v441 = vld [vmem:[%s423 + $0x40] sm:%s416]
                %442 = vst [vmem:[%s424 + $0x20] sm:%s416] %v441
                %v443 = vld [vmem:[%s423 + $0x48] sm:%s416]
                %444 = vst [vmem:[%s424 + $0x24] sm:%s416] %v443
                %v445 = vld [vmem:[%s423 + $0x50] sm:%s416]
                %446 = vst [vmem:[%s424 + $0x28] sm:%s416] %v445
                %v447 = vld [vmem:[%s423 + $0x58] sm:%s416]
                %448 = vst [vmem:[%s424 + $0x2c] sm:%s416] %v447
                %v449 = vld [vmem:[%s423 + $0x60] sm:%s416]
                %450 = vst [vmem:[%s424 + $0x30] sm:%s416] %v449
                %v451 = vld [vmem:[%s423 + $0x68] sm:%s416]
                %452 = vst [vmem:[%s424 + $0x34] sm:%s416] %v451
                %v453 = vld [vmem:[%s423 + $0x70] sm:%s416]
                %454 = vst [vmem:[%s424 + $0x38] sm:%s416] %v453
                %v455 = vld [vmem:[%s423 + $0x78] sm:%s416]
                %456 = vst [vmem:[%s424 + $0x3c] sm:%s416] %v455
              $region94: #{hnm_forward.2} parent=88 // loop_footer
                %s422 = sadd.s32 1, %s418
              $region95: #{hnm_forward.2} parent=88 // loop_footer_branch
                %417 = sbr.rel target = $region91
              $region96: #{hnm_forward.2} parent=88 // loop_exit
                _
            $region89: #{hnm_forward.2} parent=80 // pred_fallthru
              _
          $region81: #{hnm_forward.2} parent=76 // pred_fallthru
            _
          %509 = vnop
        $region77: #{hnm_forward.2} parent=31 // pred_fallthru
          _
        // Predicated region
        $region115: #{hnm_forward.2} parent=31 // pred_check
          %p510 = pneg %p103
        $region116: #{hnm_forward.2} parent=31 // pred_check_branch
          %512 = sbr.rel (%p510) target = $region118
        $region117: #{hnm_forward.2} parent=31 // pred_region
          %s513 = smul.u32 16, %s25
          %p514 = scmp.lt.s32.totalorder %s513, 31
          %s515 = scalar_select %p514, %s513, 31
          %s516 = smul.addr %s515, 4
          %s517 = scalar_lea.vmem %s2, %s516
          %s518 = smul.u32 16, %s25
        $region118: #{hnm_forward.2} parent=31 // pred_fallthru
          _
      $region32: #{hnm_forward.2} parent=5 // pred_fallthru
        _
      %p519 = scmp.le.s32.totalorder 1, %s17
      %p520 = scmp.lt.s32.totalorder %s17, 5
      %p521 = pnand %p519, %p520
      %p522 = pneg %p521
      // Predicated region
      $region119: #{hnm_forward.2} parent=5 // pred_check
        _
      $region120: #{hnm_forward.2} parent=5 // pred_check_branch
        %524 = sbr.rel (%p521) target = $region122
      $region121: #{hnm_forward.2} parent=5 // pred_region
        %s525 = ssub.s32 %s17, 1
        %s526 = sand.u32 %s42, 1
        %s527 = sand.u32 %s42, 1
        %s528 = smul.addr %s527, 64
        %s529 = scalar_lea.vmem [#allocation3], %s528
        // Predicated region
        $region123: #{hnm_forward.2} parent=121 // pred_check
          %p530 = pneg %p55
        $region124: #{hnm_forward.2} parent=121 // pred_check_branch
          %532 = sbr.rel (%p530) target = $region126
        $region125: #{hnm_forward.2} parent=121 // pred_region
          _
        $region126: #{hnm_forward.2} parent=121 // pred_fallthru
          _
        %s533 = sand.u32 %s70, 1
        %s534 = sand.u32 %s70, 1
        %s535 = smul.addr %s534, 64
        %s536 = scalar_lea.vmem [#allocation4], %s535
        // Predicated region
        $region127: #{hnm_forward.2} parent=121 // pred_check
          %p537 = pneg %p83
        $region128: #{hnm_forward.2} parent=121 // pred_check_branch
          %539 = sbr.rel (%p537) target = $region130
        $region129: #{hnm_forward.2} parent=121 // pred_region
          _
        $region130: #{hnm_forward.2} parent=121 // pred_fallthru
          _
        %s540 = sand.u32 %s42, 1
        %s541 = sand.u32 %s42, 1
        %s542 = smul.addr %s541, 64
        %s543 = scalar_lea.vmem [#allocation3], %s542
        %p544 = pneg %p55
        %p545 = pneg %p52
        %s546 = sand.u32 %s70, 1
        %s547 = sand.u32 %s70, 1
        %s548 = smul.addr %s547, 64
        %s549 = scalar_lea.vmem [#allocation4], %s548
        %p550 = pneg %p83
        %p551 = pneg %p80
        %s552 = smul.u32 16, %s27
        %p553 = scmp.lt.s32.totalorder %s552, 31
        %s554 = scalar_select %p553, %s552, 31
        %s555 = smul.addr %s554, 4
        %s556 = scalar_lea.vmem %s2, %s555
        %p557 = pneg %p109
        %p558 = pneg %p106
        %p559 = pneg %p130
        %p560 = pneg %p127
        %p561 = pneg %p151
        %p562 = pneg %p148
        %p563 = pneg %p172
        %p564 = pneg %p169
        %p565 = pneg %p193
        %p566 = pneg %p190
        %p567 = pneg %p214
        %p568 = pneg %p211
        %p569 = pneg %p235
        %p570 = pneg %p232
        %p571 = pneg %p256
        %p572 = pneg %p253
        %s573 = smul.u32 16, %s26
        %s574 = smul.u32 16, %s27
        %p575 = scmp.lt.s32.totalorder %s574, 31
        %s576 = scalar_select %p575, %s574, 31
        %s577 = smul.addr %s576, 4
        %s578 = scalar_lea.vmem %s2, %s577
        %s579 = smul.u32 16, %s27
        %p581 = scmp.eq.s32.totalorder %s26, 0
        %p582 = scmp.eq.s32.totalorder %s27, 0
        %p583 = pnand %p581, %p582
        %p584 = pneg %p583
        // Predicated region
        $region131: #{hnm_forward.2} parent=121 // pred_check
          _
        $region132: #{hnm_forward.2} parent=121 // pred_check_branch
          %586 = sbr.rel (%p583) target = $region134
        $region133: #{hnm_forward.2} parent=121 // pred_region
          %587 = vst [vmem:[#allocation2] sm:$0xff] 0.0
          %588 = vst [vmem:[#allocation2 + $0x8] sm:$0xff] 0.0
          %589 = vst [vmem:[#allocation2 + $0x10] sm:$0xff] 0.0
          %590 = vst [vmem:[#allocation2 + $0x18] sm:$0xff] 0.0
          %591 = vst [vmem:[#allocation2 + $0x20] sm:$0xff] 0.0
          %592 = vst [vmem:[#allocation2 + $0x28] sm:$0xff] 0.0
          %593 = vst [vmem:[#allocation2 + $0x30] sm:$0xff] 0.0
          %594 = vst [vmem:[#allocation2 + $0x38] sm:$0xff] 0.0
          %595 = vst [vmem:[#allocation2 + $0x40] sm:$0xff] 0.0
          %596 = vst [vmem:[#allocation2 + $0x48] sm:$0xff] 0.0
          %597 = vst [vmem:[#allocation2 + $0x50] sm:$0xff] 0.0
          %598 = vst [vmem:[#allocation2 + $0x58] sm:$0xff] 0.0
          %599 = vst [vmem:[#allocation2 + $0x60] sm:$0xff] 0.0
          %600 = vst [vmem:[#allocation2 + $0x68] sm:$0xff] 0.0
          %601 = vst [vmem:[#allocation2 + $0x70] sm:$0xff] 0.0
          %602 = vst [vmem:[#allocation2 + $0x78] sm:$0xff] 0.0
        $region134: #{hnm_forward.2} parent=121 // pred_fallthru
          _
        %v603 = vld [vmem:[%s536] sm:$0xf]
        %v604 = vld [vmem:[%s536 + $0x4] sm:$0xf]
        %v605 = vld [vmem:[%s536 + $0x8] sm:$0xf]
        %v606 = vld [vmem:[%s536 + $0xc] sm:$0xf]
        %v607 = vld [vmem:[%s536 + $0x10] sm:$0xf]
        %v608 = vld [vmem:[%s536 + $0x14] sm:$0xf]
        %v609 = vld [vmem:[%s536 + $0x18] sm:$0xf]
        %v610 = vld [vmem:[%s536 + $0x1c] sm:$0xf]
        %v611 = vld [vmem:[%s536 + $0x20] sm:$0xf]
        %v612 = vld [vmem:[%s536 + $0x24] sm:$0xf]
        %v613 = vld [vmem:[%s536 + $0x28] sm:$0xf]
        %v614 = vld [vmem:[%s536 + $0x2c] sm:$0xf]
        %v615 = vld [vmem:[%s536 + $0x30] sm:$0xf]
        %v616 = vld [vmem:[%s536 + $0x34] sm:$0xf]
        %v617 = vld [vmem:[%s536 + $0x38] sm:$0xf]
        %v618 = vld [vmem:[%s536 + $0x3c] sm:$0xf]
        %v619 = vld [vmem:[%s578] sm:$0xf]
        %v620 = vld [vmem:[%s578 + $0x4] sm:$0xf]
        %v621 = vld [vmem:[%s578 + $0x8] sm:$0xf]
        %v622 = vld [vmem:[%s578 + $0xc] sm:$0xf]
        %v623 = vld [vmem:[%s578 + $0x10] sm:$0xf]
        %v624 = vld [vmem:[%s578 + $0x14] sm:$0xf]
        %v625 = vld [vmem:[%s578 + $0x18] sm:$0xf]
        %v626 = vld [vmem:[%s578 + $0x1c] sm:$0xf]
        %v627 = vld [vmem:[%s578 + $0x20] sm:$0xf]
        %v628 = vld [vmem:[%s578 + $0x24] sm:$0xf]
        %v629 = vld [vmem:[%s578 + $0x28] sm:$0xf]
        %v630 = vld [vmem:[%s578 + $0x2c] sm:$0xf]
        %v631 = vld [vmem:[%s578 + $0x30] sm:$0xf]
        %v632 = vld [vmem:[%s578 + $0x34] sm:$0xf]
        %v633 = vld [vmem:[%s578 + $0x38] sm:$0xf]
        %v634 = vld [vmem:[%s578 + $0x3c] sm:$0xf]
        %v651 = vunpack.c.l.b16 %v603
        %v652 = vunpack.c.l.b16 %v604
        %v653 = vunpack.c.l.b16 %v605
        %v654 = vunpack.c.l.b16 %v606
        %v655 = vunpack.c.l.b16 %v607
        %v656 = vunpack.c.l.b16 %v608
        %v657 = vunpack.c.l.b16 %v609
        %v658 = vunpack.c.l.b16 %v610
        %v659 = vunpack.c.l.b16 %v611
        %v660 = vunpack.c.l.b16 %v612
        %v661 = vunpack.c.l.b16 %v613
        %v662 = vunpack.c.l.b16 %v614
        %v663 = vunpack.c.l.b16 %v615
        %v664 = vunpack.c.l.b16 %v616
        %v665 = vunpack.c.l.b16 %v617
        %v666 = vunpack.c.l.b16 %v618
        %v667 = vpack.c.b16 %v652, %v651
        %v668 = vpack.c.b16 %v654, %v653
        %v669 = vpack.c.b16 %v656, %v655
        %v670 = vpack.c.b16 %v658, %v657
        %v671 = vpack.c.b16 %v660, %v659
        %v672 = vpack.c.b16 %v662, %v661
        %v673 = vpack.c.b16 %v664, %v663
        %v674 = vpack.c.b16 %v666, %v665
        %v699 = vunpack.c.l.b16 %v619
        %v700 = vunpack.c.l.b16 %v620
        %v701 = vunpack.c.l.b16 %v621
        %v702 = vunpack.c.l.b16 %v622
        %v703 = vunpack.c.l.b16 %v623
        %v704 = vunpack.c.l.b16 %v624
        %v705 = vunpack.c.l.b16 %v625
        %v706 = vunpack.c.l.b16 %v626
        %v707 = vunpack.c.l.b16 %v627
        %v708 = vunpack.c.l.b16 %v628
        %v709 = vunpack.c.l.b16 %v629
        %v710 = vunpack.c.l.b16 %v630
        %v711 = vunpack.c.l.b16 %v631
        %v712 = vunpack.c.l.b16 %v632
        %v713 = vunpack.c.l.b16 %v633
        %v714 = vunpack.c.l.b16 %v634
        %v715 = vpack.c.b16 %v700, %v699
        %v716 = vpack.c.b16 %v702, %v701
        %v717 = vpack.c.b16 %v704, %v703
        %v718 = vpack.c.b16 %v706, %v705
        %v719 = vpack.c.b16 %v708, %v707
        %v720 = vpack.c.b16 %v710, %v709
        %v721 = vpack.c.b16 %v712, %v711
        %v722 = vpack.c.b16 %v714, %v713
        %731 = vmatprep.subr.bf16.mxu0 0
        %732 = vmatpush1.bf16.msra.mxu0 %v722
        %733 = vmatprep.subr.bf16.mxu0 0
        %734 = vmatpush1.bf16.msra.mxu0 %v721
        %735 = vmatprep.subr.bf16.mxu0 0
        %736 = vmatpush1.bf16.msra.mxu0 %v720
        %737 = vmatprep.subr.bf16.mxu0 0
        %738 = vmatpush1.bf16.msra.mxu0 %v719
        %739 = vmatprep.subr.bf16.mxu0 0
        %740 = vmatpush1.bf16.msra.mxu0 %v718
        %741 = vmatprep.subr.bf16.mxu0 0
        %742 = vmatpush1.bf16.msra.mxu0 %v717
        %743 = vmatprep.subr.bf16.mxu0 0
        %744 = vmatpush1.bf16.msra.mxu0 %v716
        %745 = vmatprep.subr.bf16.mxu0 0
        %746 = vmatpush1.bf16.msra.mxu0 %v715
        %747 = vmatprep.subr.bf16.mxu0 0
        %748 = vmatpush2.bf16.msra.mxu0 0
        %749 = vmatprep.subr.bf16.mxu0 0
        %750 = vmatpush2.bf16.msra.mxu0 0
        %751 = vmatprep.subr.bf16.mxu0 0
        %752 = vmatpush2.bf16.msra.mxu0 0
        %753 = vmatprep.subr.bf16.mxu0 0
        %754 = vmatpush2.bf16.msra.mxu0 0
        %755 = vmatprep.subr.bf16.mxu0 0
        %756 = vmatpush2.bf16.msra.mxu0 0
        %757 = vmatprep.subr.bf16.mxu0 0
        %758 = vmatpush2.bf16.msra.mxu0 0
        %759 = vmatprep.subr.bf16.mxu0 0
        %760 = vmatpush2.bf16.msra.mxu0 0
        %761 = vmatprep.subr.bf16.mxu0 0
        %762 = vmatpush2.bf16.msra.mxu0 0
        %763 = vmatprep.mubr.bf16.mxu0 0
        %764 = vmatmul.mubr.bf16.gmra.mxu0 %v667
        %v765 = vpop.f32.mrf.mxu0
        %v766 = vadd.f32 0.0, %v765
        %v767 = vpop.f32.mrf.mxu0
        %v768 = vpop.f32.mrf.mxu0
        %v769 = vadd.f32 0.0, %v768
        %v770 = vpop.f32.mrf.mxu0
        %771 = vmatprep.mubr.bf16.mxu0 0
        %772 = vmatmul.mubr.bf16.gmra.mxu0 %v668
        %v773 = vpop.f32.mrf.mxu0
        %v774 = vadd.f32 0.0, %v773
        %v775 = vpop.f32.mrf.mxu0
        %v776 = vpop.f32.mrf.mxu0
        %v777 = vadd.f32 0.0, %v776
        %v778 = vpop.f32.mrf.mxu0
        %779 = vmatprep.mubr.bf16.mxu0 0
        %780 = vmatmul.mubr.bf16.gmra.mxu0 %v669
        %v781 = vpop.f32.mrf.mxu0
        %v782 = vadd.f32 0.0, %v781
        %v783 = vpop.f32.mrf.mxu0
        %v784 = vpop.f32.mrf.mxu0
        %v785 = vadd.f32 0.0, %v784
        %v786 = vpop.f32.mrf.mxu0
        %787 = vmatprep.mubr.bf16.mxu0 0
        %788 = vmatmul.mubr.bf16.gmra.mxu0 %v670
        %v789 = vpop.f32.mrf.mxu0
        %v790 = vadd.f32 0.0, %v789
        %v791 = vpop.f32.mrf.mxu0
        %v792 = vpop.f32.mrf.mxu0
        %v793 = vadd.f32 0.0, %v792
        %v794 = vpop.f32.mrf.mxu0
        %795 = vmatprep.mubr.bf16.mxu0 0
        %796 = vmatmul.mubr.bf16.gmra.mxu0 %v671
        %v797 = vpop.f32.mrf.mxu0
        %v798 = vadd.f32 0.0, %v797
        %v799 = vpop.f32.mrf.mxu0
        %v800 = vpop.f32.mrf.mxu0
        %v801 = vadd.f32 0.0, %v800
        %v802 = vpop.f32.mrf.mxu0
        %803 = vmatprep.mubr.bf16.mxu0 0
        %804 = vmatmul.mubr.bf16.gmra.mxu0 %v672
        %v805 = vpop.f32.mrf.mxu0
        %v806 = vadd.f32 0.0, %v805
        %v807 = vpop.f32.mrf.mxu0
        %v808 = vpop.f32.mrf.mxu0
        %v809 = vadd.f32 0.0, %v808
        %v810 = vpop.f32.mrf.mxu0
        %811 = vmatprep.mubr.bf16.mxu0 0
        %812 = vmatmul.mubr.bf16.gmra.mxu0 %v673
        %v813 = vpop.f32.mrf.mxu0
        %v814 = vadd.f32 0.0, %v813
        %v815 = vpop.f32.mrf.mxu0
        %v816 = vpop.f32.mrf.mxu0
        %v817 = vadd.f32 0.0, %v816
        %v818 = vpop.f32.mrf.mxu0
        %819 = vmatprep.mubr.bf16.mxu0 0
        %820 = vmatmul.mubr.bf16.gmra.mxu0 %v674
        %v821 = vpop.f32.mrf.mxu0
        %v822 = vadd.f32 0.0, %v821
        %v823 = vpop.f32.mrf.mxu0
        %v824 = vpop.f32.mrf.mxu0
        %v825 = vadd.f32 0.0, %v824
        %v826 = vpop.f32.mrf.mxu0
        %827 = vdwg.mxu0
        %v828 = vld [vmem:[#allocation2] sm:$0xff]
        %v829 = vld [vmem:[#allocation2 + $0x8] sm:$0xff]
        %v830 = vld [vmem:[#allocation2 + $0x10] sm:$0xff]
        %v831 = vld [vmem:[#allocation2 + $0x18] sm:$0xff]
        %v832 = vld [vmem:[#allocation2 + $0x20] sm:$0xff]
        %v833 = vld [vmem:[#allocation2 + $0x28] sm:$0xff]
        %v834 = vld [vmem:[#allocation2 + $0x30] sm:$0xff]
        %v835 = vld [vmem:[#allocation2 + $0x38] sm:$0xff]
        %v836 = vld [vmem:[#allocation2 + $0x40] sm:$0xff]
        %v837 = vld [vmem:[#allocation2 + $0x48] sm:$0xff]
        %v838 = vld [vmem:[#allocation2 + $0x50] sm:$0xff]
        %v839 = vld [vmem:[#allocation2 + $0x58] sm:$0xff]
        %v840 = vld [vmem:[#allocation2 + $0x60] sm:$0xff]
        %v841 = vld [vmem:[#allocation2 + $0x68] sm:$0xff]
        %v842 = vld [vmem:[#allocation2 + $0x70] sm:$0xff]
        %v843 = vld [vmem:[#allocation2 + $0x78] sm:$0xff]
        %v844 = vld [vmem:[%s529] sm:$0xf]
        %v845 = vld [vmem:[%s529 + $0x4] sm:$0xf]
        %v846 = vld [vmem:[%s529 + $0x8] sm:$0xf]
        %v847 = vld [vmem:[%s529 + $0xc] sm:$0xf]
        %v848 = vld [vmem:[%s529 + $0x10] sm:$0xf]
        %v849 = vld [vmem:[%s529 + $0x14] sm:$0xf]
        %v850 = vld [vmem:[%s529 + $0x18] sm:$0xf]
        %v851 = vld [vmem:[%s529 + $0x1c] sm:$0xf]
        %v852 = vld [vmem:[%s529 + $0x20] sm:$0xf]
        %v853 = vld [vmem:[%s529 + $0x24] sm:$0xf]
        %v854 = vld [vmem:[%s529 + $0x28] sm:$0xf]
        %v855 = vld [vmem:[%s529 + $0x2c] sm:$0xf]
        %v856 = vld [vmem:[%s529 + $0x30] sm:$0xf]
        %v857 = vld [vmem:[%s529 + $0x34] sm:$0xf]
        %v858 = vld [vmem:[%s529 + $0x38] sm:$0xf]
        %v859 = vld [vmem:[%s529 + $0x3c] sm:$0xf]
        %v860 = vpack.c.bf16 %v769, %v766
        %v861 = vpack.c.bf16 %v777, %v774
        %v862 = vpack.c.bf16 %v785, %v782
        %v863 = vpack.c.bf16 %v793, %v790
        %v864 = vpack.c.bf16 %v801, %v798
        %v865 = vpack.c.bf16 %v809, %v806
        %v866 = vpack.c.bf16 %v817, %v814
        %v867 = vpack.c.bf16 %v825, %v822
        %v884 = vunpack.c.l.b16 %v844
        %v885 = vunpack.c.l.b16 %v845
        %v886 = vunpack.c.l.b16 %v846
        %v887 = vunpack.c.l.b16 %v847
        %v888 = vunpack.c.l.b16 %v848
        %v889 = vunpack.c.l.b16 %v849
        %v890 = vunpack.c.l.b16 %v850
        %v891 = vunpack.c.l.b16 %v851
        %v892 = vunpack.c.l.b16 %v852
        %v893 = vunpack.c.l.b16 %v853
        %v894 = vunpack.c.l.b16 %v854
        %v895 = vunpack.c.l.b16 %v855
        %v896 = vunpack.c.l.b16 %v856
        %v897 = vunpack.c.l.b16 %v857
        %v898 = vunpack.c.l.b16 %v858
        %v899 = vunpack.c.l.b16 %v859
        %v900 = vpack.c.b16 %v885, %v884
        %v901 = vpack.c.b16 %v887, %v886
        %v902 = vpack.c.b16 %v889, %v888
        %v903 = vpack.c.b16 %v891, %v890
        %v904 = vpack.c.b16 %v893, %v892
        %v905 = vpack.c.b16 %v895, %v894
        %v906 = vpack.c.b16 %v897, %v896
        %v907 = vpack.c.b16 %v899, %v898
        %916 = vmatprep.subr.bf16.mxu0 0
        %917 = vmatpush1.bf16.msra.mxu0 %v867
        %918 = vmatprep.subr.bf16.mxu0 0
        %919 = vmatpush1.bf16.msra.mxu0 %v866
        %920 = vmatprep.subr.bf16.mxu0 0
        %921 = vmatpush1.bf16.msra.mxu0 %v865
        %922 = vmatprep.subr.bf16.mxu0 0
        %923 = vmatpush1.bf16.msra.mxu0 %v864
        %924 = vmatprep.subr.bf16.mxu0 0
        %925 = vmatpush1.bf16.msra.mxu0 %v863
        %926 = vmatprep.subr.bf16.mxu0 0
        %927 = vmatpush1.bf16.msra.mxu0 %v862
        %928 = vmatprep.subr.bf16.mxu0 0
        %929 = vmatpush1.bf16.msra.mxu0 %v861
        %930 = vmatprep.subr.bf16.mxu0 0
        %931 = vmatpush1.bf16.msra.mxu0 %v860
        %932 = vmatprep.subr.bf16.mxu0 0
        %933 = vmatpush2.bf16.msra.mxu0 0
        %934 = vmatprep.subr.bf16.mxu0 0
        %935 = vmatpush2.bf16.msra.mxu0 0
        %936 = vmatprep.subr.bf16.mxu0 0
        %937 = vmatpush2.bf16.msra.mxu0 0
        %938 = vmatprep.subr.bf16.mxu0 0
        %939 = vmatpush2.bf16.msra.mxu0 0
        %940 = vmatprep.subr.bf16.mxu0 0
        %941 = vmatpush2.bf16.msra.mxu0 0
        %942 = vmatprep.subr.bf16.mxu0 0
        %943 = vmatpush2.bf16.msra.mxu0 0
        %944 = vmatprep.subr.bf16.mxu0 0
        %945 = vmatpush2.bf16.msra.mxu0 0
        %946 = vmatprep.subr.bf16.mxu0 0
        %947 = vmatpush2.bf16.msra.mxu0 0
        %948 = vmatprep.mubr.bf16.mxu0 0
        %949 = vmatmul.mubr.bf16.gmra.mxu0 %v900
        %v950 = vpop.f32.mrf.mxu0
        %v951 = vadd.f32 0.0, %v950
        %v952 = vpop.f32.mrf.mxu0
        %v953 = vpop.f32.mrf.mxu0
        %v954 = vadd.f32 0.0, %v953
        %v955 = vpop.f32.mrf.mxu0
        %956 = vmatprep.mubr.bf16.mxu0 0
        %957 = vmatmul.mubr.bf16.gmra.mxu0 %v901
        %v958 = vpop.f32.mrf.mxu0
        %v959 = vadd.f32 0.0, %v958
        %v960 = vpop.f32.mrf.mxu0
        %v961 = vpop.f32.mrf.mxu0
        %v962 = vadd.f32 0.0, %v961
        %v963 = vpop.f32.mrf.mxu0
        %964 = vmatprep.mubr.bf16.mxu0 0
        %965 = vmatmul.mubr.bf16.gmra.mxu0 %v902
        %v966 = vpop.f32.mrf.mxu0
        %v967 = vadd.f32 0.0, %v966
        %v968 = vpop.f32.mrf.mxu0
        %v969 = vpop.f32.mrf.mxu0
        %v970 = vadd.f32 0.0, %v969
        %v971 = vpop.f32.mrf.mxu0
        %972 = vmatprep.mubr.bf16.mxu0 0
        %973 = vmatmul.mubr.bf16.gmra.mxu0 %v903
        %v974 = vpop.f32.mrf.mxu0
        %v975 = vadd.f32 0.0, %v974
        %v976 = vpop.f32.mrf.mxu0
        %v977 = vpop.f32.mrf.mxu0
        %v978 = vadd.f32 0.0, %v977
        %v979 = vpop.f32.mrf.mxu0
        %980 = vmatprep.mubr.bf16.mxu0 0
        %981 = vmatmul.mubr.bf16.gmra.mxu0 %v904
        %v982 = vpop.f32.mrf.mxu0
        %v983 = vadd.f32 0.0, %v982
        %v984 = vpop.f32.mrf.mxu0
        %v985 = vpop.f32.mrf.mxu0
        %v986 = vadd.f32 0.0, %v985
        %v987 = vpop.f32.mrf.mxu0
        %988 = vmatprep.mubr.bf16.mxu0 0
        %989 = vmatmul.mubr.bf16.gmra.mxu0 %v905
        %v990 = vpop.f32.mrf.mxu0
        %v991 = vadd.f32 0.0, %v990
        %v992 = vpop.f32.mrf.mxu0
        %v993 = vpop.f32.mrf.mxu0
        %v994 = vadd.f32 0.0, %v993
        %v995 = vpop.f32.mrf.mxu0
        %996 = vmatprep.mubr.bf16.mxu0 0
        %997 = vmatmul.mubr.bf16.gmra.mxu0 %v906
        %v998 = vpop.f32.mrf.mxu0
        %v999 = vadd.f32 0.0, %v998
        %v1000 = vpop.f32.mrf.mxu0
        %v1001 = vpop.f32.mrf.mxu0
        %v1002 = vadd.f32 0.0, %v1001
        %v1003 = vpop.f32.mrf.mxu0
        %1004 = vmatprep.mubr.bf16.mxu0 0
        %1005 = vmatmul.mubr.bf16.gmra.mxu0 %v907
        %v1006 = vpop.f32.mrf.mxu0
        %v1007 = vadd.f32 0.0, %v1006
        %v1008 = vpop.f32.mrf.mxu0
        %v1009 = vpop.f32.mrf.mxu0
        %v1010 = vadd.f32 0.0, %v1009
        %v1011 = vpop.f32.mrf.mxu0
        %1012 = vdwg.mxu0
        %v1013 = vadd.f32 %v828, %v951
        %v1014 = vadd.f32 %v829, %v954
        %v1015 = vadd.f32 %v830, %v959
        %v1016 = vadd.f32 %v831, %v962
        %v1017 = vadd.f32 %v832, %v967
        %v1018 = vadd.f32 %v833, %v970
        %v1019 = vadd.f32 %v834, %v975
        %v1020 = vadd.f32 %v835, %v978
        %v1021 = vadd.f32 %v836, %v983
        %v1022 = vadd.f32 %v837, %v986
        %v1023 = vadd.f32 %v838, %v991
        %v1024 = vadd.f32 %v839, %v994
        %v1025 = vadd.f32 %v840, %v999
        %v1026 = vadd.f32 %v841, %v1002
        %v1027 = vadd.f32 %v842, %v1007
        %v1028 = vadd.f32 %v843, %v1010
        %1029 = vst [vmem:[#allocation2] sm:$0xff] %v1013
        %1030 = vst [vmem:[#allocation2 + $0x8] sm:$0xff] %v1014
        %1031 = vst [vmem:[#allocation2 + $0x10] sm:$0xff] %v1015
        %1032 = vst [vmem:[#allocation2 + $0x18] sm:$0xff] %v1016
        %1033 = vst [vmem:[#allocation2 + $0x20] sm:$0xff] %v1017
        %1034 = vst [vmem:[#allocation2 + $0x28] sm:$0xff] %v1018
        %1035 = vst [vmem:[#allocation2 + $0x30] sm:$0xff] %v1019
        %1036 = vst [vmem:[#allocation2 + $0x38] sm:$0xff] %v1020
        %1037 = vst [vmem:[#allocation2 + $0x40] sm:$0xff] %v1021
        %1038 = vst [vmem:[#allocation2 + $0x48] sm:$0xff] %v1022
        %1039 = vst [vmem:[#allocation2 + $0x50] sm:$0xff] %v1023
        %1040 = vst [vmem:[#allocation2 + $0x58] sm:$0xff] %v1024
        %1041 = vst [vmem:[#allocation2 + $0x60] sm:$0xff] %v1025
        %1042 = vst [vmem:[#allocation2 + $0x68] sm:$0xff] %v1026
        %1043 = vst [vmem:[#allocation2 + $0x70] sm:$0xff] %v1027
        %1044 = vst [vmem:[#allocation2 + $0x78] sm:$0xff] %v1028
        %p1045 = scmp.eq.s32.totalorder %s26, 1
        %p1046 = scmp.eq.s32.totalorder %s27, 1
        %p1047 = pnand %p1045, %p1046
        %p1048 = pneg %p1047
        // Predicated region
        $region135: #{hnm_forward.2} parent=121 // pred_check
          _
        $region136: #{hnm_forward.2} parent=121 // pred_check_branch
          %1050 = sbr.rel (%p1047) target = $region138
        $region137: #{hnm_forward.2} parent=121 // pred_region
          %v1051 = vld [vmem:[%s4] sm:$0xff]
          %v1052 = vld [vmem:[%s4 + $0x8] sm:$0xff]
          %v1053 = vld [vmem:[%s4 + $0x10] sm:$0xff]
          %v1054 = vld [vmem:[%s4 + $0x18] sm:$0xff]
          %v1055 = vld [vmem:[%s4 + $0x20] sm:$0xff]
          %v1056 = vld [vmem:[%s4 + $0x28] sm:$0xff]
          %v1057 = vld [vmem:[%s4 + $0x30] sm:$0xff]
          %v1058 = vld [vmem:[%s4 + $0x38] sm:$0xff]
          %v1059 = vld [vmem:[%s4 + $0x40] sm:$0xff]
          %v1060 = vld [vmem:[%s4 + $0x48] sm:$0xff]
          %v1061 = vld [vmem:[%s4 + $0x50] sm:$0xff]
          %v1062 = vld [vmem:[%s4 + $0x58] sm:$0xff]
          %v1063 = vld [vmem:[%s4 + $0x60] sm:$0xff]
          %v1064 = vld [vmem:[%s4 + $0x68] sm:$0xff]
          %v1065 = vld [vmem:[%s4 + $0x70] sm:$0xff]
          %v1066 = vld [vmem:[%s4 + $0x78] sm:$0xff]
          %v1067 = vld [vmem:[%s3] sm:$0xf]
          %v1068 = vld [vmem:[%s3 + $0x4] sm:$0xf]
          %v1069 = vld [vmem:[%s3 + $0x8] sm:$0xf]
          %v1070 = vld [vmem:[%s3 + $0xc] sm:$0xf]
          %v1071 = vld [vmem:[%s3 + $0x10] sm:$0xf]
          %v1072 = vld [vmem:[%s3 + $0x14] sm:$0xf]
          %v1073 = vld [vmem:[%s3 + $0x18] sm:$0xf]
          %v1074 = vld [vmem:[%s3 + $0x1c] sm:$0xf]
          %v1075 = vld [vmem:[%s3 + $0x20] sm:$0xf]
          %v1076 = vld [vmem:[%s3 + $0x24] sm:$0xf]
          %v1077 = vld [vmem:[%s3 + $0x28] sm:$0xf]
          %v1078 = vld [vmem:[%s3 + $0x2c] sm:$0xf]
          %v1079 = vld [vmem:[%s3 + $0x30] sm:$0xf]
          %v1080 = vld [vmem:[%s3 + $0x34] sm:$0xf]
          %v1081 = vld [vmem:[%s3 + $0x38] sm:$0xf]
          %v1082 = vld [vmem:[%s3 + $0x3c] sm:$0xf]
          %v1083 = vpack.c.bf16 %v1052, %v1051
          %v1084 = vpack.c.bf16 %v1054, %v1053
          %v1085 = vpack.c.bf16 %v1056, %v1055
          %v1086 = vpack.c.bf16 %v1058, %v1057
          %v1087 = vpack.c.bf16 %v1060, %v1059
          %v1088 = vpack.c.bf16 %v1062, %v1061
          %v1089 = vpack.c.bf16 %v1064, %v1063
          %v1090 = vpack.c.bf16 %v1066, %v1065
          %v1107 = vunpack.c.l.b16 %v1067
          %v1108 = vunpack.c.l.b16 %v1068
          %v1109 = vunpack.c.l.b16 %v1069
          %v1110 = vunpack.c.l.b16 %v1070
          %v1111 = vunpack.c.l.b16 %v1071
          %v1112 = vunpack.c.l.b16 %v1072
          %v1113 = vunpack.c.l.b16 %v1073
          %v1114 = vunpack.c.l.b16 %v1074
          %v1115 = vunpack.c.l.b16 %v1075
          %v1116 = vunpack.c.l.b16 %v1076
          %v1117 = vunpack.c.l.b16 %v1077
          %v1118 = vunpack.c.l.b16 %v1078
          %v1119 = vunpack.c.l.b16 %v1079
          %v1120 = vunpack.c.l.b16 %v1080
          %v1121 = vunpack.c.l.b16 %v1081
          %v1122 = vunpack.c.l.b16 %v1082
          %v1123 = vpack.c.b16 %v1108, %v1107
          %v1124 = vpack.c.b16 %v1110, %v1109
          %v1125 = vpack.c.b16 %v1112, %v1111
          %v1126 = vpack.c.b16 %v1114, %v1113
          %v1127 = vpack.c.b16 %v1116, %v1115
          %v1128 = vpack.c.b16 %v1118, %v1117
          %v1129 = vpack.c.b16 %v1120, %v1119
          %v1130 = vpack.c.b16 %v1122, %v1121
          %1139 = vmatprep.subr.bf16.mxu0 0
          %1140 = vmatpush1.bf16.msra.mxu0 %v1090
          %1141 = vmatprep.subr.bf16.mxu0 0
          %1142 = vmatpush1.bf16.msra.mxu0 %v1089
          %1143 = vmatprep.subr.bf16.mxu0 0
          %1144 = vmatpush1.bf16.msra.mxu0 %v1088
          %1145 = vmatprep.subr.bf16.mxu0 0
          %1146 = vmatpush1.bf16.msra.mxu0 %v1087
          %1147 = vmatprep.subr.bf16.mxu0 0
          %1148 = vmatpush1.bf16.msra.mxu0 %v1086
          %1149 = vmatprep.subr.bf16.mxu0 0
          %1150 = vmatpush1.bf16.msra.mxu0 %v1085
          %1151 = vmatprep.subr.bf16.mxu0 0
          %1152 = vmatpush1.bf16.msra.mxu0 %v1084
          %1153 = vmatprep.subr.bf16.mxu0 0
          %1154 = vmatpush1.bf16.msra.mxu0 %v1083
          %1155 = vmatprep.subr.bf16.mxu0 0
          %1156 = vmatpush2.bf16.msra.mxu0 0
          %1157 = vmatprep.subr.bf16.mxu0 0
          %1158 = vmatpush2.bf16.msra.mxu0 0
          %1159 = vmatprep.subr.bf16.mxu0 0
          %1160 = vmatpush2.bf16.msra.mxu0 0
          %1161 = vmatprep.subr.bf16.mxu0 0
          %1162 = vmatpush2.bf16.msra.mxu0 0
          %1163 = vmatprep.subr.bf16.mxu0 0
          %1164 = vmatpush2.bf16.msra.mxu0 0
          %1165 = vmatprep.subr.bf16.mxu0 0
          %1166 = vmatpush2.bf16.msra.mxu0 0
          %1167 = vmatprep.subr.bf16.mxu0 0
          %1168 = vmatpush2.bf16.msra.mxu0 0
          %1169 = vmatprep.subr.bf16.mxu0 0
          %1170 = vmatpush2.bf16.msra.mxu0 0
          %1171 = vmatprep.mubr.bf16.mxu0 0
          %1172 = vmatmul.mubr.bf16.gmra.mxu0 %v1123
          %v1173 = vpop.f32.mrf.mxu0
          %v1174 = vadd.f32 0.0, %v1173
          %v1175 = vpop.f32.mrf.mxu0
          %v1176 = vpop.f32.mrf.mxu0
          %v1177 = vadd.f32 0.0, %v1176
          %v1178 = vpop.f32.mrf.mxu0
          %1179 = vmatprep.mubr.bf16.mxu0 0
          %1180 = vmatmul.mubr.bf16.gmra.mxu0 %v1124
          %v1181 = vpop.f32.mrf.mxu0
          %v1182 = vadd.f32 0.0, %v1181
          %v1183 = vpop.f32.mrf.mxu0
          %v1184 = vpop.f32.mrf.mxu0
          %v1185 = vadd.f32 0.0, %v1184
          %v1186 = vpop.f32.mrf.mxu0
          %1187 = vmatprep.mubr.bf16.mxu0 0
          %1188 = vmatmul.mubr.bf16.gmra.mxu0 %v1125
          %v1189 = vpop.f32.mrf.mxu0
          %v1190 = vadd.f32 0.0, %v1189
          %v1191 = vpop.f32.mrf.mxu0
          %v1192 = vpop.f32.mrf.mxu0
          %v1193 = vadd.f32 0.0, %v1192
          %v1194 = vpop.f32.mrf.mxu0
          %1195 = vmatprep.mubr.bf16.mxu0 0
          %1196 = vmatmul.mubr.bf16.gmra.mxu0 %v1126
          %v1197 = vpop.f32.mrf.mxu0
          %v1198 = vadd.f32 0.0, %v1197
          %v1199 = vpop.f32.mrf.mxu0
          %v1200 = vpop.f32.mrf.mxu0
          %v1201 = vadd.f32 0.0, %v1200
          %v1202 = vpop.f32.mrf.mxu0
          %1203 = vmatprep.mubr.bf16.mxu0 0
          %1204 = vmatmul.mubr.bf16.gmra.mxu0 %v1127
          %v1205 = vpop.f32.mrf.mxu0
          %v1206 = vadd.f32 0.0, %v1205
          %v1207 = vpop.f32.mrf.mxu0
          %v1208 = vpop.f32.mrf.mxu0
          %v1209 = vadd.f32 0.0, %v1208
          %v1210 = vpop.f32.mrf.mxu0
          %1211 = vmatprep.mubr.bf16.mxu0 0
          %1212 = vmatmul.mubr.bf16.gmra.mxu0 %v1128
          %v1213 = vpop.f32.mrf.mxu0
          %v1214 = vadd.f32 0.0, %v1213
          %v1215 = vpop.f32.mrf.mxu0
          %v1216 = vpop.f32.mrf.mxu0
          %v1217 = vadd.f32 0.0, %v1216
          %v1218 = vpop.f32.mrf.mxu0
          %1219 = vmatprep.mubr.bf16.mxu0 0
          %1220 = vmatmul.mubr.bf16.gmra.mxu0 %v1129
          %v1221 = vpop.f32.mrf.mxu0
          %v1222 = vadd.f32 0.0, %v1221
          %v1223 = vpop.f32.mrf.mxu0
          %v1224 = vpop.f32.mrf.mxu0
          %v1225 = vadd.f32 0.0, %v1224
          %v1226 = vpop.f32.mrf.mxu0
          %1227 = vmatprep.mubr.bf16.mxu0 0
          %1228 = vmatmul.mubr.bf16.gmra.mxu0 %v1130
          %v1229 = vpop.f32.mrf.mxu0
          %v1230 = vadd.f32 0.0, %v1229
          %v1231 = vpop.f32.mrf.mxu0
          %v1232 = vpop.f32.mrf.mxu0
          %v1233 = vadd.f32 0.0, %v1232
          %v1234 = vpop.f32.mrf.mxu0
          %1235 = vdwg.mxu0
          %v1236 = vpack.c.bf16 %v1177, %v1174
          %v1237 = vpack.c.bf16 %v1185, %v1182
          %v1238 = vpack.c.bf16 %v1193, %v1190
          %v1239 = vpack.c.bf16 %v1201, %v1198
          %v1240 = vpack.c.bf16 %v1209, %v1206
          %v1241 = vpack.c.bf16 %v1217, %v1214
          %v1242 = vpack.c.bf16 %v1225, %v1222
          %v1243 = vpack.c.bf16 %v1233, %v1230
          %v1252 = vunpack.c.l.b16 %v1236
          %v1253 = vunpack.c.h.b16 %v1236
          %v1254 = vunpack.c.l.b16 %v1237
          %v1255 = vunpack.c.h.b16 %v1237
          %v1256 = vunpack.c.l.b16 %v1238
          %v1257 = vunpack.c.h.b16 %v1238
          %v1258 = vunpack.c.l.b16 %v1239
          %v1259 = vunpack.c.h.b16 %v1239
          %v1260 = vunpack.c.l.b16 %v1240
          %v1261 = vunpack.c.h.b16 %v1240
          %v1262 = vunpack.c.l.b16 %v1241
          %v1263 = vunpack.c.h.b16 %v1241
          %v1264 = vunpack.c.l.b16 %v1242
          %v1265 = vunpack.c.h.b16 %v1242
          %v1266 = vunpack.c.l.b16 %v1243
          %v1267 = vunpack.c.h.b16 %v1243
          %v1268 = vpack.c.b16 %v1252, %v1252
          %v1269 = vpack.c.b16 %v1253, %v1253
          %v1270 = vpack.c.b16 %v1254, %v1254
          %v1271 = vpack.c.b16 %v1255, %v1255
          %v1272 = vpack.c.b16 %v1256, %v1256
          %v1273 = vpack.c.b16 %v1257, %v1257
          %v1274 = vpack.c.b16 %v1258, %v1258
          %v1275 = vpack.c.b16 %v1259, %v1259
          %v1276 = vpack.c.b16 %v1260, %v1260
          %v1277 = vpack.c.b16 %v1261, %v1261
          %v1278 = vpack.c.b16 %v1262, %v1262
          %v1279 = vpack.c.b16 %v1263, %v1263
          %v1280 = vpack.c.b16 %v1264, %v1264
          %v1281 = vpack.c.b16 %v1265, %v1265
          %v1282 = vpack.c.b16 %v1266, %v1266
          %v1283 = vpack.c.b16 %v1267, %v1267
          %1300 = vst [vmem:[%s8] sm:$0xf] %v1268
          %1301 = vst [vmem:[%s8 + $0x4] sm:$0xf] %v1269
          %1302 = vst [vmem:[%s8 + $0x8] sm:$0xf] %v1270
          %1303 = vst [vmem:[%s8 + $0xc] sm:$0xf] %v1271
          %1304 = vst [vmem:[%s8 + $0x10] sm:$0xf] %v1272
          %1305 = vst [vmem:[%s8 + $0x14] sm:$0xf] %v1273
          %1306 = vst [vmem:[%s8 + $0x18] sm:$0xf] %v1274
          %1307 = vst [vmem:[%s8 + $0x1c] sm:$0xf] %v1275
          %1308 = vst [vmem:[%s8 + $0x20] sm:$0xf] %v1276
          %1309 = vst [vmem:[%s8 + $0x24] sm:$0xf] %v1277
          %1310 = vst [vmem:[%s8 + $0x28] sm:$0xf] %v1278
          %1311 = vst [vmem:[%s8 + $0x2c] sm:$0xf] %v1279
          %1312 = vst [vmem:[%s8 + $0x30] sm:$0xf] %v1280
          %1313 = vst [vmem:[%s8 + $0x34] sm:$0xf] %v1281
          %1314 = vst [vmem:[%s8 + $0x38] sm:$0xf] %v1282
          %1315 = vst [vmem:[%s8 + $0x3c] sm:$0xf] %v1283
          %v1316 = vld [vmem:[#allocation2] sm:$0xff]
          %v1317 = vld [vmem:[#allocation2 + $0x8] sm:$0xff]
          %v1318 = vld [vmem:[#allocation2 + $0x10] sm:$0xff]
          %v1319 = vld [vmem:[#allocation2 + $0x18] sm:$0xff]
          %v1320 = vld [vmem:[#allocation2 + $0x20] sm:$0xff]
          %v1321 = vld [vmem:[#allocation2 + $0x28] sm:$0xff]
          %v1322 = vld [vmem:[#allocation2 + $0x30] sm:$0xff]
          %v1323 = vld [vmem:[#allocation2 + $0x38] sm:$0xff]
          %v1324 = vld [vmem:[#allocation2 + $0x40] sm:$0xff]
          %v1325 = vld [vmem:[#allocation2 + $0x48] sm:$0xff]
          %v1326 = vld [vmem:[#allocation2 + $0x50] sm:$0xff]
          %v1327 = vld [vmem:[#allocation2 + $0x58] sm:$0xff]
          %v1328 = vld [vmem:[#allocation2 + $0x60] sm:$0xff]
          %v1329 = vld [vmem:[#allocation2 + $0x68] sm:$0xff]
          %v1330 = vld [vmem:[#allocation2 + $0x70] sm:$0xff]
          %v1331 = vld [vmem:[#allocation2 + $0x78] sm:$0xff]
          %v1332 = vpack.c.bf16 %v1317, %v1316
          %v1333 = vpack.c.bf16 %v1319, %v1318
          %v1334 = vpack.c.bf16 %v1321, %v1320
          %v1335 = vpack.c.bf16 %v1323, %v1322
          %v1336 = vpack.c.bf16 %v1325, %v1324
          %v1337 = vpack.c.bf16 %v1327, %v1326
          %v1338 = vpack.c.bf16 %v1329, %v1328
          %v1339 = vpack.c.bf16 %v1331, %v1330
          %1340 = vmatprep.subr.bf16.mxu0 0
          %1341 = vmatpush1.bf16.msra.mxu0 %v1243
          %1342 = vmatprep.subr.bf16.mxu0 0
          %1343 = vmatpush1.bf16.msra.mxu0 %v1242
          %1344 = vmatprep.subr.bf16.mxu0 0
          %1345 = vmatpush1.bf16.msra.mxu0 %v1241
          %1346 = vmatprep.subr.bf16.mxu0 0
          %1347 = vmatpush1.bf16.msra.mxu0 %v1240
          %1348 = vmatprep.subr.bf16.mxu0 0
          %1349 = vmatpush1.bf16.msra.mxu0 %v1239
          %1350 = vmatprep.subr.bf16.mxu0 0
          %1351 = vmatpush1.bf16.msra.mxu0 %v1238
          %1352 = vmatprep.subr.bf16.mxu0 0
          %1353 = vmatpush1.bf16.msra.mxu0 %v1237
          %1354 = vmatprep.subr.bf16.mxu0 0
          %1355 = vmatpush1.bf16.msra.mxu0 %v1236
          %1356 = vmatprep.subr.bf16.mxu0 0
          %1357 = vmatpush2.bf16.msra.mxu0 0
          %1358 = vmatprep.subr.bf16.mxu0 0
          %1359 = vmatpush2.bf16.msra.mxu0 0
          %1360 = vmatprep.subr.bf16.mxu0 0
          %1361 = vmatpush2.bf16.msra.mxu0 0
          %1362 = vmatprep.subr.bf16.mxu0 0
          %1363 = vmatpush2.bf16.msra.mxu0 0
          %1364 = vmatprep.subr.bf16.mxu0 0
          %1365 = vmatpush2.bf16.msra.mxu0 0
          %1366 = vmatprep.subr.bf16.mxu0 0
          %1367 = vmatpush2.bf16.msra.mxu0 0
          %1368 = vmatprep.subr.bf16.mxu0 0
          %1369 = vmatpush2.bf16.msra.mxu0 0
          %1370 = vmatprep.subr.bf16.mxu0 0
          %1371 = vmatpush2.bf16.msra.mxu0 0
          %1372 = vmatprep.mubr.bf16.mxu0 0
          %1373 = vmatmul.mubr.bf16.gmra.mxu0 %v1332
          %v1374 = vpop.f32.mrf.mxu0
          %v1375 = vadd.f32 0.0, %v1374
          %v1376 = vpop.f32.mrf.mxu0
          %v1377 = vpop.f32.mrf.mxu0
          %v1378 = vadd.f32 0.0, %v1377
          %v1379 = vpop.f32.mrf.mxu0
          %1380 = vmatprep.mubr.bf16.mxu0 0
          %1381 = vmatmul.mubr.bf16.gmra.mxu0 %v1333
          %v1382 = vpop.f32.mrf.mxu0
          %v1383 = vadd.f32 0.0, %v1382
          %v1384 = vpop.f32.mrf.mxu0
          %v1385 = vpop.f32.mrf.mxu0
          %v1386 = vadd.f32 0.0, %v1385
          %v1387 = vpop.f32.mrf.mxu0
          %1388 = vmatprep.mubr.bf16.mxu0 0
          %1389 = vmatmul.mubr.bf16.gmra.mxu0 %v1334
          %v1390 = vpop.f32.mrf.mxu0
          %v1391 = vadd.f32 0.0, %v1390
          %v1392 = vpop.f32.mrf.mxu0
          %v1393 = vpop.f32.mrf.mxu0
          %v1394 = vadd.f32 0.0, %v1393
          %v1395 = vpop.f32.mrf.mxu0
          %1396 = vmatprep.mubr.bf16.mxu0 0
          %1397 = vmatmul.mubr.bf16.gmra.mxu0 %v1335
          %v1398 = vpop.f32.mrf.mxu0
          %v1399 = vadd.f32 0.0, %v1398
          %v1400 = vpop.f32.mrf.mxu0
          %v1401 = vpop.f32.mrf.mxu0
          %v1402 = vadd.f32 0.0, %v1401
          %v1403 = vpop.f32.mrf.mxu0
          %1404 = vmatprep.mubr.bf16.mxu0 0
          %1405 = vmatmul.mubr.bf16.gmra.mxu0 %v1336
          %v1406 = vpop.f32.mrf.mxu0
          %v1407 = vadd.f32 0.0, %v1406
          %v1408 = vpop.f32.mrf.mxu0
          %v1409 = vpop.f32.mrf.mxu0
          %v1410 = vadd.f32 0.0, %v1409
          %v1411 = vpop.f32.mrf.mxu0
          %1412 = vmatprep.mubr.bf16.mxu0 0
          %1413 = vmatmul.mubr.bf16.gmra.mxu0 %v1337
          %v1414 = vpop.f32.mrf.mxu0
          %v1415 = vadd.f32 0.0, %v1414
          %v1416 = vpop.f32.mrf.mxu0
          %v1417 = vpop.f32.mrf.mxu0
          %v1418 = vadd.f32 0.0, %v1417
          %v1419 = vpop.f32.mrf.mxu0
          %1420 = vmatprep.mubr.bf16.mxu0 0
          %1421 = vmatmul.mubr.bf16.gmra.mxu0 %v1338
          %v1422 = vpop.f32.mrf.mxu0
          %v1423 = vadd.f32 0.0, %v1422
          %v1424 = vpop.f32.mrf.mxu0
          %v1425 = vpop.f32.mrf.mxu0
          %v1426 = vadd.f32 0.0, %v1425
          %v1427 = vpop.f32.mrf.mxu0
          %1428 = vmatprep.mubr.bf16.mxu0 0
          %1429 = vmatmul.mubr.bf16.gmra.mxu0 %v1339
          %v1430 = vpop.f32.mrf.mxu0
          %v1431 = vadd.f32 0.0, %v1430
          %v1432 = vpop.f32.mrf.mxu0
          %v1433 = vpop.f32.mrf.mxu0
          %v1434 = vadd.f32 0.0, %v1433
          %v1435 = vpop.f32.mrf.mxu0
          %1436 = vdwg.mxu0
          %v1437 = vld [vmem:[%s5] sm:$0xff]
          %v1438 = vld [vmem:[%s5 + $0x8] sm:$0xff]
          %v1439 = vld [vmem:[%s5 + $0x10] sm:$0xff]
          %v1440 = vld [vmem:[%s5 + $0x18] sm:$0xff]
          %v1441 = vld [vmem:[%s5 + $0x20] sm:$0xff]
          %v1442 = vld [vmem:[%s5 + $0x28] sm:$0xff]
          %v1443 = vld [vmem:[%s5 + $0x30] sm:$0xff]
          %v1444 = vld [vmem:[%s5 + $0x38] sm:$0xff]
          %v1445 = vld [vmem:[%s5 + $0x40] sm:$0xff]
          %v1446 = vld [vmem:[%s5 + $0x48] sm:$0xff]
          %v1447 = vld [vmem:[%s5 + $0x50] sm:$0xff]
          %v1448 = vld [vmem:[%s5 + $0x58] sm:$0xff]
          %v1449 = vld [vmem:[%s5 + $0x60] sm:$0xff]
          %v1450 = vld [vmem:[%s5 + $0x68] sm:$0xff]
          %v1451 = vld [vmem:[%s5 + $0x70] sm:$0xff]
          %v1452 = vld [vmem:[%s5 + $0x78] sm:$0xff]
          %v1453 = vld [vmem:[%s6] sm:$0xff]
          %v1454 = vld [vmem:[%s6 + $0x8] sm:$0xff]
          %v1455 = vld [vmem:[%s6 + $0x10] sm:$0xff]
          %v1456 = vld [vmem:[%s6 + $0x18] sm:$0xff]
          %v1457 = vld [vmem:[%s6 + $0x20] sm:$0xff]
          %v1458 = vld [vmem:[%s6 + $0x28] sm:$0xff]
          %v1459 = vld [vmem:[%s6 + $0x30] sm:$0xff]
          %v1460 = vld [vmem:[%s6 + $0x38] sm:$0xff]
          %v1461 = vld [vmem:[%s6 + $0x40] sm:$0xff]
          %v1462 = vld [vmem:[%s6 + $0x48] sm:$0xff]
          %v1463 = vld [vmem:[%s6 + $0x50] sm:$0xff]
          %v1464 = vld [vmem:[%s6 + $0x58] sm:$0xff]
          %v1465 = vld [vmem:[%s6 + $0x60] sm:$0xff]
          %v1466 = vld [vmem:[%s6 + $0x68] sm:$0xff]
          %v1467 = vld [vmem:[%s6 + $0x70] sm:$0xff]
          %v1468 = vld [vmem:[%s6 + $0x78] sm:$0xff]
          %v1469 = vmul.f32 %v1375, 0.4
          %v1470 = vmul.f32 %v1378, 0.4
          %v1471 = vmul.f32 %v1383, 0.4
          %v1472 = vmul.f32 %v1386, 0.4
          %v1473 = vmul.f32 %v1391, 0.4
          %v1474 = vmul.f32 %v1394, 0.4
          %v1475 = vmul.f32 %v1399, 0.4
          %v1476 = vmul.f32 %v1402, 0.4
          %v1477 = vmul.f32 %v1407, 0.4
          %v1478 = vmul.f32 %v1410, 0.4
          %v1479 = vmul.f32 %v1415, 0.4
          %v1480 = vmul.f32 %v1418, 0.4
          %v1481 = vmul.f32 %v1423, 0.4
          %v1482 = vmul.f32 %v1426, 0.4
          %v1483 = vmul.f32 %v1431, 0.4
          %v1484 = vmul.f32 %v1434, 0.4
          %v1485 = vmul.f32 %v1437, 0.6
          %v1486 = vmul.f32 %v1438, 0.6
          %v1487 = vmul.f32 %v1439, 0.6
          %v1488 = vmul.f32 %v1440, 0.6
          %v1489 = vmul.f32 %v1441, 0.6
          %v1490 = vmul.f32 %v1442, 0.6
          %v1491 = vmul.f32 %v1443, 0.6
          %v1492 = vmul.f32 %v1444, 0.6
          %v1493 = vmul.f32 %v1445, 0.6
          %v1494 = vmul.f32 %v1446, 0.6
          %v1495 = vmul.f32 %v1447, 0.6
          %v1496 = vmul.f32 %v1448, 0.6
          %v1497 = vmul.f32 %v1449, 0.6
          %v1498 = vmul.f32 %v1450, 0.6
          %v1499 = vmul.f32 %v1451, 0.6
          %v1500 = vmul.f32 %v1452, 0.6
          %v1501 = vmul.f32 %v1485, %v1453
          %v1502 = vmul.f32 %v1486, %v1454
          %v1503 = vmul.f32 %v1487, %v1455
          %v1504 = vmul.f32 %v1488, %v1456
          %v1505 = vmul.f32 %v1489, %v1457
          %v1506 = vmul.f32 %v1490, %v1458
          %v1507 = vmul.f32 %v1491, %v1459
          %v1508 = vmul.f32 %v1492, %v1460
          %v1509 = vmul.f32 %v1493, %v1461
          %v1510 = vmul.f32 %v1494, %v1462
          %v1511 = vmul.f32 %v1495, %v1463
          %v1512 = vmul.f32 %v1496, %v1464
          %v1513 = vmul.f32 %v1497, %v1465
          %v1514 = vmul.f32 %v1498, %v1466
          %v1515 = vmul.f32 %v1499, %v1467
          %v1516 = vmul.f32 %v1500, %v1468
          %v1517 = vadd.f32 %v1469, %v1501
          %v1518 = vadd.f32 %v1470, %v1502
          %v1519 = vadd.f32 %v1471, %v1503
          %v1520 = vadd.f32 %v1472, %v1504
          %v1521 = vadd.f32 %v1473, %v1505
          %v1522 = vadd.f32 %v1474, %v1506
          %v1523 = vadd.f32 %v1475, %v1507
          %v1524 = vadd.f32 %v1476, %v1508
          %v1525 = vadd.f32 %v1477, %v1509
          %v1526 = vadd.f32 %v1478, %v1510
          %v1527 = vadd.f32 %v1479, %v1511
          %v1528 = vadd.f32 %v1480, %v1512
          %v1529 = vadd.f32 %v1481, %v1513
          %v1530 = vadd.f32 %v1482, %v1514
          %v1531 = vadd.f32 %v1483, %v1515
          %v1532 = vadd.f32 %v1484, %v1516
          %1533 = vst [vmem:[%s7] sm:$0xff] %v1517
          %1534 = vst [vmem:[%s7 + $0x8] sm:$0xff] %v1518
          %1535 = vst [vmem:[%s7 + $0x10] sm:$0xff] %v1519
          %1536 = vst [vmem:[%s7 + $0x18] sm:$0xff] %v1520
          %1537 = vst [vmem:[%s7 + $0x20] sm:$0xff] %v1521
          %1538 = vst [vmem:[%s7 + $0x28] sm:$0xff] %v1522
          %1539 = vst [vmem:[%s7 + $0x30] sm:$0xff] %v1523
          %1540 = vst [vmem:[%s7 + $0x38] sm:$0xff] %v1524
          %1541 = vst [vmem:[%s7 + $0x40] sm:$0xff] %v1525
          %1542 = vst [vmem:[%s7 + $0x48] sm:$0xff] %v1526
          %1543 = vst [vmem:[%s7 + $0x50] sm:$0xff] %v1527
          %1544 = vst [vmem:[%s7 + $0x58] sm:$0xff] %v1528
          %1545 = vst [vmem:[%s7 + $0x60] sm:$0xff] %v1529
          %1546 = vst [vmem:[%s7 + $0x68] sm:$0xff] %v1530
          %1547 = vst [vmem:[%s7 + $0x70] sm:$0xff] %v1531
          %1548 = vst [vmem:[%s7 + $0x78] sm:$0xff] %v1532
          %v1549 = vsub.f32 %v1051, %v1437
          %v1550 = vsub.f32 %v1052, %v1438
          %v1551 = vsub.f32 %v1053, %v1439
          %v1552 = vsub.f32 %v1054, %v1440
          %v1553 = vsub.f32 %v1055, %v1441
          %v1554 = vsub.f32 %v1056, %v1442
          %v1555 = vsub.f32 %v1057, %v1443
          %v1556 = vsub.f32 %v1058, %v1444
          %v1557 = vsub.f32 %v1059, %v1445
          %v1558 = vsub.f32 %v1060, %v1446
          %v1559 = vsub.f32 %v1061, %v1447
          %v1560 = vsub.f32 %v1062, %v1448
          %v1561 = vsub.f32 %v1063, %v1449
          %v1562 = vsub.f32 %v1064, %v1450
          %v1563 = vsub.f32 %v1065, %v1451
          %v1564 = vsub.f32 %v1066, %v1452
          %v1565 = vmul.f32 %v1453, %v1549
          %v1566 = vmul.f32 %v1454, %v1550
          %v1567 = vmul.f32 %v1455, %v1551
          %v1568 = vmul.f32 %v1456, %v1552
          %v1569 = vmul.f32 %v1457, %v1553
          %v1570 = vmul.f32 %v1458, %v1554
          %v1571 = vmul.f32 %v1459, %v1555
          %v1572 = vmul.f32 %v1460, %v1556
          %v1573 = vmul.f32 %v1461, %v1557
          %v1574 = vmul.f32 %v1462, %v1558
          %v1575 = vmul.f32 %v1463, %v1559
          %v1576 = vmul.f32 %v1464, %v1560
          %v1577 = vmul.f32 %v1465, %v1561
          %v1578 = vmul.f32 %v1466, %v1562
          %v1579 = vmul.f32 %v1467, %v1563
          %v1580 = vmul.f32 %v1468, %v1564
          %v1581 = vmul.f32 %v1565, %v1565
          %v1582 = vmul.f32 %v1566, %v1566
          %v1583 = vmul.f32 %v1567, %v1567
          %v1584 = vmul.f32 %v1568, %v1568
          %v1585 = vmul.f32 %v1569, %v1569
          %v1586 = vmul.f32 %v1570, %v1570
          %v1587 = vmul.f32 %v1571, %v1571
          %v1588 = vmul.f32 %v1572, %v1572
          %v1589 = vmul.f32 %v1573, %v1573
          %v1590 = vmul.f32 %v1574, %v1574
          %v1591 = vmul.f32 %v1575, %v1575
          %v1592 = vmul.f32 %v1576, %v1576
          %v1593 = vmul.f32 %v1577, %v1577
          %v1594 = vmul.f32 %v1578, %v1578
          %v1595 = vmul.f32 %v1579, %v1579
          %v1596 = vmul.f32 %v1580, %v1580
          %v1597 = vadd.f32 %v1581, %v1582
          %v1598 = vadd.f32 %v1597, %v1583
          %v1599 = vadd.f32 %v1598, %v1584
          %v1600 = vadd.f32 %v1599, %v1585
          %v1601 = vadd.f32 %v1600, %v1586
          %v1602 = vadd.f32 %v1601, %v1587
          %v1603 = vadd.f32 %v1602, %v1588
          %v1604 = vadd.f32 %v1603, %v1589
          %v1605 = vadd.f32 %v1604, %v1590
          %v1606 = vadd.f32 %v1605, %v1591
          %v1607 = vadd.f32 %v1606, %v1592
          %v1608 = vadd.f32 %v1607, %v1593
          %v1609 = vadd.f32 %v1608, %v1594
          %v1610 = vadd.f32 %v1609, %v1595
          %v1611 = vadd.f32 %v1610, %v1596
          %1612 = vadd.xlane.f32.xlu0 %v1611
          %v1613 = vpop.xlane.xlu0 %1612
          %v1614 = vrot.slane %v1613, 4
          %v1615 = vadd.f32 %v1613, %v1614
          %v1616 = vrot.slane %v1615, 2
          %v1617 = vadd.f32 %v1615, %v1616
          %v1618 = vrot.slane %v1617, 1
          %v1619 = vadd.f32 %v1617, %v1618
          %s1620 = vtos %v1619
          %v1621 = vstv %s1620
          %vm1622 = vcmask 0
          %1623 = vst.msk [vmem:[#allocation5] sm:$0x1] %vm1622, %v1621
        $region138: #{hnm_forward.2} parent=121 // pred_fallthru
          _
        // Predicated region
        $region139: #{hnm_forward.2} parent=121 // pred_check
          %p1624 = pneg %p211
        $region140: #{hnm_forward.2} parent=121 // pred_check_branch
          %1626 = sbr.rel (%p1624) target = $region142
        $region141: #{hnm_forward.2} parent=121 // pred_region
          _
        $region142: #{hnm_forward.2} parent=121 // pred_fallthru
          _
        // Predicated region
        $region143: #{hnm_forward.2} parent=121 // pred_check
          %p1627 = pneg %p232
        $region144: #{hnm_forward.2} parent=121 // pred_check_branch
          %1629 = sbr.rel (%p1627) target = $region146
        $region145: #{hnm_forward.2} parent=121 // pred_region
          _
        $region146: #{hnm_forward.2} parent=121 // pred_fallthru
          _
        // Predicated region
        $region147: #{hnm_forward.2} parent=121 // pred_check
          %p1630 = pneg %p253
        $region148: #{hnm_forward.2} parent=121 // pred_check_branch
          %1632 = sbr.rel (%p1630) target = $region150
        $region149: #{hnm_forward.2} parent=121 // pred_region
          %s1634 = ssub.s32 16, 16
          %1635 = vsyncadd [#allocation6], %s1634
          %s1637 = sshll.u32 [#allocation5], 4
          %s1638 = int_to_ptr.vmem [resolvable:$true] %s1637
          %1640 = dma.vmem_to_hbm [thread:$0]  %s1638, 16, %s9, [#allocation6]
        $region150: #{hnm_forward.2} parent=121 // pred_fallthru
          _
        // Predicated region
        $region151: #{hnm_forward.2} parent=121 // pred_check
          %p1641 = pneg %p211
        $region152: #{hnm_forward.2} parent=121 // pred_check_branch
          %1643 = sbr.rel (%p1641) target = $region154
        $region153: #{hnm_forward.2} parent=121 // pred_region
          _
        $region154: #{hnm_forward.2} parent=121 // pred_fallthru
          _
        // Predicated region
        $region155: #{hnm_forward.2} parent=121 // pred_check
          %p1644 = pneg %p232
        $region156: #{hnm_forward.2} parent=121 // pred_check_branch
          %1646 = sbr.rel (%p1644) target = $region158
        $region157: #{hnm_forward.2} parent=121 // pred_region
          _
        $region158: #{hnm_forward.2} parent=121 // pred_fallthru
          _
        // Predicated region
        $region159: #{hnm_forward.2} parent=121 // pred_check
          %p1647 = pneg %p253
        $region160: #{hnm_forward.2} parent=121 // pred_check_branch
          %1649 = sbr.rel (%p1647) target = $region162
        $region161: #{hnm_forward.2} parent=121 // pred_region
          %1650 = dma.done [#allocation6], 16
        $region162: #{hnm_forward.2} parent=121 // pred_fallthru
          _
      $region122: #{hnm_forward.2} parent=5 // pred_fallthru
        _
      %p1651 = scmp.le.s32.totalorder 2, %s17
      // Predicated region
      $region163: #{hnm_forward.2} parent=5 // pred_check
        %p1652 = pneg %p1651
      $region164: #{hnm_forward.2} parent=5 // pred_check_branch
        %1654 = sbr.rel (%p1652) target = $region166
      $region165: #{hnm_forward.2} parent=5 // pred_region
        %s1655 = ssub.s32 %s17, 2
      $region166: #{hnm_forward.2} parent=5 // pred_fallthru
        _
    $region6: #{hnm_forward.2} parent=1 // loop_footer
      %s21 = sadd.s32 1, %s17
    $region7: #{hnm_forward.2} parent=1 // loop_footer_branch
      %16 = sbr.rel target = $region3
    $region8: #{hnm_forward.2} parent=1 // loop_exit
      _
    %1656 = vsyncpa [#allocation6], 1
    %s1657 = scalar_lea.sflag [#allocation6], 1
    %1658 = vsyncpa %s1657, 1

</llo_original>
